<compile_context>
chip_gen: v5e
topology: v5e:2x2
jax: 0.10.0
libtpu: 0.0.40
codegen_flags: <defaults>
</compile_context>

<pallas_src>
import functools

import jax
import jax.numpy as jnp
from jax import lax
from jax.experimental import pallas as pl
from jax.experimental.pallas import tpu as pltpu


def lora_conv2d_forward(x_nchw, weight_oihw, bias, A, B, s,
                        *, stride=1, padding=1, tile_l=2048):
    """Fused LoRA-updated conv2d forward. Heavy lifting in a single Pallas kernel."""
    N, Cin, H, W = x_nchw.shape
    Cout, Cin_w, kH, kW = weight_oihw.shape
    assert Cin == Cin_w
    # Load-bearing for the PyTorch trailing-dim broadcast in the reference module:
    assert kH == Cout and kW == Cin, "torch broadcast requires kH == Cout and kW == Cin"

    f32 = jnp.float32
    Ho = (H + 2 * padding - kH) // stride + 1
    Wo = (W + 2 * padding - kW) // stride + 1
    Hp, Wp = H + 2 * padding, W + 2 * padding
    L = N * Hp * Wp                      # flattened padded spatial length (output columns)
    K = kH * kW * Cin
    Cout_pad = max(8, ((Cout + 7) // 8) * 8)

    # Largest static tap shift along the flattened spatial axis, and the halo width
    # (multiple of 128 lanes) each tile must read past its right edge.
    maxshift = (kH - 1) * Wp + (kW - 1)
    Hcols = max(128, ((maxshift + 127) // 128) * 128)

    # Tile of the flattened spatial axis: multiple of Hcols (hence of 128), clamped to
    # what is needed.  Demo passes 384 -> 2 tiles (v7x: one per TensorCore).
    L_ceil = pl.cdiv(L, Hcols) * Hcols
    tile_l = max(Hcols, (min(tile_l, L_ceil) // Hcols) * Hcols)
    n_tiles = pl.cdiv(L, tile_l)
    L_out_pad = n_tiles * tile_l
    L_in_pad = L_out_pad + Hcols         # room for the last tile's halo fetch

    # ---- wrapper-side layout (no im2col): channel-major flattened padded input ------
    x_c = jnp.transpose(x_nchw, (1, 0, 2, 3)).astype(f32)               # (Cin, N, H, W)
    xp = jnp.pad(x_c, ((0, 0), (0, 0), (padding, padding), (padding, padding)))
    xflat = xp.reshape(Cin, L)
    xflat = jnp.pad(xflat, ((0, 0), (0, L_in_pad - L)))                  # (Cin, L_in_pad)

    # ---- LoRA delta folded into the conv weight (grid-invariant, a few 4x4 ops) -----
    delta = (A.astype(f32) @ B.astype(f32)) * jax.nn.sigmoid(s.astype(f32))  # (Cout, Cin)
    w_upd = weight_oihw.astype(f32) + delta        # trailing-dim broadcast, same as torch
    w_t = jnp.transpose(w_upd, (0, 2, 3, 1)).reshape(Cout, K)            # [o, (kh,kw,cin)]
    w_t = jnp.pad(w_t, ((0, Cout_pad - Cout), (0, 0)))                   # (Cout_pad, K)
    bias_col = jnp.pad(bias.reshape(Cout, 1).astype(f32),
                       ((0, Cout_pad - Cout), (0, 0)))                   # (Cout_pad, 1)

    # ---- the kernel: pure (shifted) matmul + bias, all slices static ----------------
    def kernel(w_ref, b_ref, x_ref, xh_ref, o_ref):
        # Current tile plus its right halo (both 128-aligned widths).
        win = jnp.concatenate([x_ref[...], xh_ref[...]], axis=1)   # (Cin, tile_l + Hcols)
        acc = jnp.zeros(o_ref.shape, jnp.float32)                  # (Cout_pad, tile_l)
        for kh in range(kH):                                       # static tap loop
            for kw in range(kW):
                t = kh * kW + kw
                d = kh * Wp + kw                                    # static lane shift
                slab = win[:, d:d + tile_l]                         # (Cin, tile_l)
                wt = w_ref[:, t * Cin:(t + 1) * Cin]                # (Cout_pad, Cin)
                acc = acc + jnp.dot(wt, slab, preferred_element_type=jnp.float32)
        o_ref[...] = acc + b_ref[...]

    # VMEM budget: sized to actual use (double-buffered streamed blocks + residents).
    in_main_b = Cin * tile_l * 4
    halo_b = Cin * Hcols * 4
    out_b = Cout_pad * tile_l * 4
    res_b = (Cout_pad * K + Cout_pad) * 4
    vmem_limit = int(min(64 * 1024 * 1024,
                         max(2 * 1024 * 1024, 4 * (2 * (in_main_b + halo_b + out_b) + res_b))))

    cost = pl.CostEstimate(
        flops=2 * Cout_pad * Cin * kH * kW * L_out_pad,
        transcendentals=0,
        bytes_accessed=int(4 * (Cin * L_in_pad + n_tiles * Cin * Hcols
                                + Cout_pad * L_out_pad + Cout_pad * K + Cout_pad)),
    )

    out_flat = pl.pallas_call(
        kernel,
        out_shape=jax.ShapeDtypeStruct((Cout_pad, L_out_pad), f32),
        grid=(n_tiles,),
        in_specs=[
            pl.BlockSpec((Cout_pad, K), lambda i: (0, 0)),          # updated weight (resident)
            pl.BlockSpec((Cout_pad, 1), lambda i: (0, 0)),          # bias (resident)
            pl.BlockSpec((Cin, tile_l), lambda i: (0, i)),          # streamed input tile
            pl.BlockSpec((Cin, Hcols),                              # right halo of the tile
                         lambda i: (0, (i + 1) * (tile_l // Hcols))),
        ],
        out_specs=pl.BlockSpec((Cout_pad, tile_l), lambda i: (0, i)),
        compiler_params=pltpu.CompilerParams(
            dimension_semantics=("parallel",),
            vmem_limit_bytes=vmem_limit,
        ),
        cost_estimate=cost,
    )(w_t, bias_col, xflat, xflat)

    # Valid output columns are q = n*Hp*Wp + h'*Wp + w' with h' = ho*stride, w' = wo*stride.
    out_full = out_flat[:Cout, :L].reshape(Cout, N, Hp, Wp)
    out = out_full[:, :, :(Ho - 1) * stride + 1:stride, :(Wo - 1) * stride + 1:stride]
    return jnp.transpose(out, (1, 0, 2, 3))                         # (N, Cout, Ho, Wo)


def lora_conv2d_reference(x_nchw, weight_oihw, bias, A, B, s, *, stride=1, padding=1):
    """Pure-JAX f32 reference mirroring the PyTorch forward line-by-line."""
    delta = (A @ B) * jax.nn.sigmoid(s)             # (Cout, Cin) * (1,) -> (Cout, Cin)
    updated_w = weight_oihw + delta                 # trailing-dim broadcast, as in torch
    out = lax.conv_general_dilated(
        x_nchw, updated_w,
        window_strides=(stride, stride),
        padding=((padding, padding), (padding, padding)),
        dimension_numbers=("NCHW", "OIHW", "NCHW"),
        precision=lax.Precision.HIGHEST)
    return out + bias[None, :, None, None]


if __name__ == "__main__":
    # Small shapes consistent with the module (kH == Cout, kW == Cin so the torch
    # broadcast is well-defined).
    N, Cin, H, W = 2, 4, 16, 16
    Cout, kH, kW = 4, 4, 4
    rank, downsample_factor = 2, 16
    stride, padding = 1, 1

    key = jax.random.PRNGKey(0)
    k_x, k_w, k_b, k_a, k_bb = jax.random.split(key, 5)

    x = jax.random.normal(k_x, (N, Cin, H, W), jnp.float32)
    conv_weight = 0.1 * jax.random.normal(k_w, (Cout, Cin, kH, kW), jnp.float32)
    conv_bias = 0.1 * jax.random.normal(k_b, (Cout,), jnp.float32)
    A = jax.random.normal(k_a, (Cout, rank), jnp.float32) / downsample_factor
    B = jax.random.normal(k_bb, (rank, Cin), jnp.float32) / downsample_factor
    s = jnp.zeros((1,), jnp.float32)       # matches nn.Parameter(torch.zeros(1))

    # tile_l=384 -> L=648 flattened columns split into 2 parallel grid steps (exercises
    # the pipelined grid; lets a v7x megacore use both TensorCores).
    fwd = jax.jit(functools.partial(lora_conv2d_forward,
                                    stride=stride, padding=padding, tile_l=384))
    out = jax.block_until_ready(fwd(x, conv_weight, conv_bias, A, B, s))

    ref = jax.block_until_ready(
        lora_conv2d_reference(x, conv_weight, conv_bias, A, B, s,
                              stride=stride, padding=padding))

    Ho = (H + 2 * padding - kH) // stride + 1
    Wo = (W + 2 * padding - kW) // stride + 1
    assert out.shape == ref.shape == (N, Cout, Ho, Wo)
    # Both matmul operands are f32 now; tolerance tightened vs. the bf16 v2 kernel.
    max_err = jnp.max(jnp.abs(out - ref))
    assert jnp.allclose(out, ref, rtol=1e-2, atol=1e-2), f"max abs err = {max_err}"
    print("KERNEL_OK")
</pallas_src>

<mosaic_0001>
module attributes {stable_mosaic.version = 11 : i64} {
  func.func @kernel(%arg0: i32, %arg1: memref<8x64xf32, #tpu.memory_space<vmem>>, %arg2: memref<8x1xf32, #tpu.memory_space<vmem>>, %arg3: memref<4x384xf32, #tpu.memory_space<vmem>>, %arg4: memref<4x128xf32, #tpu.memory_space<vmem>>, %arg5: memref<8x384xf32, #tpu.memory_space<vmem>>) attributes {dimension_semantics = [#tpu.dimension_semantics<parallel>], iteration_bounds = array<i64: 2>, scalar_prefetch = 0 : i64, scratch_operands = 0 : i64, tpu.core_type = #tpu.core_type<tc>, window_params = [{pipeline_mode = #tpu.pipeline_mode<synchronous>, transform_indices = @transform_0, window_bounds = array<i64: 8, 64>}, {pipeline_mode = #tpu.pipeline_mode<synchronous>, transform_indices = @transform_1, window_bounds = array<i64: 8, 1>}, {transform_indices = @transform_2, window_bounds = array<i64: 4, 384>}, {transform_indices = @transform_3, window_bounds = array<i64: 4, 128>}, {transform_indices = @transform_4, window_bounds = array<i64: 8, 384>}]} {
    %c0 = arith.constant 0 : index
    %c0_0 = arith.constant 0 : index
    %0 = vector.load %arg3[%c0, %c0_0] : memref<4x384xf32, #tpu.memory_space<vmem>>, vector<4x384xf32>
    %c0_1 = arith.constant 0 : index
    %c0_2 = arith.constant 0 : index
    %1 = vector.load %arg4[%c0_1, %c0_2] : memref<4x128xf32, #tpu.memory_space<vmem>>, vector<4x128xf32>
    %2 = tpu.concatenate %0, %1 in 1 : vector<4x384xf32>, vector<4x128xf32> -> vector<4x512xf32>
    %cst = arith.constant 0.000000e+00 : f32
    %3 = vector.broadcast %cst : f32 to vector<8x384xf32>
    %4 = vector.extract_strided_slice %2 {offsets = [0, 0], sizes = [4, 384], strides = [1, 1]} : vector<4x512xf32> to vector<4x384xf32>
    %c0_3 = arith.constant 0 : index
    %c0_4 = arith.constant 0 : index
    %5 = vector.load %arg1[%c0_3, %c0_4] : memref<8x64xf32, #tpu.memory_space<vmem>>, vector<8x4xf32>
    %cst_5 = arith.constant dense<0.000000e+00> : vector<8x384xf32>
    %6 = tpu.matmul %5, %4, %cst_5 {dimension_numbers = #tpu.dot_dimension_numbers<[1], [0], [0], [1], [0, 0, 1, 1], [], []>} : vector<8x4xf32>, vector<4x384xf32>, vector<8x384xf32> -> vector<8x384xf32>
    %7 = arith.addf %3, %6 : vector<8x384xf32>
    %8 = vector.extract_strided_slice %2 {offsets = [0, 1], sizes = [4, 384], strides = [1, 1]} : vector<4x512xf32> to vector<4x384xf32>
    %c0_6 = arith.constant 0 : index
    %c4 = arith.constant 4 : index
    %9 = vector.load %arg1[%c0_6, %c4] : memref<8x64xf32, #tpu.memory_space<vmem>>, vector<8x4xf32>
    %cst_7 = arith.constant dense<0.000000e+00> : vector<8x384xf32>
    %10 = tpu.matmul %9, %8, %cst_7 {dimension_numbers = #tpu.dot_dimension_numbers<[1], [0], [0], [1], [0, 0, 1, 1], [], []>} : vector<8x4xf32>, vector<4x384xf32>, vector<8x384xf32> -> vector<8x384xf32>
    %11 = arith.addf %7, %10 : vector<8x384xf32>
    %12 = vector.extract_strided_slice %2 {offsets = [0, 2], sizes = [4, 384], strides = [1, 1]} : vector<4x512xf32> to vector<4x384xf32>
    %c0_8 = arith.constant 0 : index
    %c8 = arith.constant 8 : index
    %13 = vector.load %arg1[%c0_8, %c8] : memref<8x64xf32, #tpu.memory_space<vmem>>, vector<8x4xf32>
    %cst_9 = arith.constant dense<0.000000e+00> : vector<8x384xf32>
    %14 = tpu.matmul %13, %12, %cst_9 {dimension_numbers = #tpu.dot_dimension_numbers<[1], [0], [0], [1], [0, 0, 1, 1], [], []>} : vector<8x4xf32>, vector<4x384xf32>, vector<8x384xf32> -> vector<8x384xf32>
    %15 = arith.addf %11, %14 : vector<8x384xf32>
    %16 = vector.extract_strided_slice %2 {offsets = [0, 3], sizes = [4, 384], strides = [1, 1]} : vector<4x512xf32> to vector<4x384xf32>
    %c0_10 = arith.constant 0 : index
    %c12 = arith.constant 12 : index
    %17 = vector.load %arg1[%c0_10, %c12] : memref<8x64xf32, #tpu.memory_space<vmem>>, vector<8x4xf32>
    %cst_11 = arith.constant dense<0.000000e+00> : vector<8x384xf32>
    %18 = tpu.matmul %17, %16, %cst_11 {dimension_numbers = #tpu.dot_dimension_numbers<[1], [0], [0], [1], [0, 0, 1, 1], [], []>} : vector<8x4xf32>, vector<4x384xf32>, vector<8x384xf32> -> vector<8x384xf32>
    %19 = arith.addf %15, %18 : vector<8x384xf32>
    %20 = vector.extract_strided_slice %2 {offsets = [0, 18], sizes = [4, 384], strides = [1, 1]} : vector<4x512xf32> to vector<4x384xf32>
    %c0_12 = arith.constant 0 : index
    %c16 = arith.constant 16 : index
    %21 = vector.load %arg1[%c0_12, %c16] : memref<8x64xf32, #tpu.memory_space<vmem>>, vector<8x4xf32>
    %cst_13 = arith.constant dense<0.000000e+00> : vector<8x384xf32>
    %22 = tpu.matmul %21, %20, %cst_13 {dimension_numbers = #tpu.dot_dimension_numbers<[1], [0], [0], [1], [0, 0, 1, 1], [], []>} : vector<8x4xf32>, vector<4x384xf32>, vector<8x384xf32> -> vector<8x384xf32>
    %23 = arith.addf %19, %22 : vector<8x384xf32>
    %24 = vector.extract_strided_slice %2 {offsets = [0, 19], sizes = [4, 384], strides = [1, 1]} : vector<4x512xf32> to vector<4x384xf32>
    %c0_14 = arith.constant 0 : index
    %c20 = arith.constant 20 : index
    %25 = vector.load %arg1[%c0_14, %c20] : memref<8x64xf32, #tpu.memory_space<vmem>>, vector<8x4xf32>
    %cst_15 = arith.constant dense<0.000000e+00> : vector<8x384xf32>
    %26 = tpu.matmul %25, %24, %cst_15 {dimension_numbers = #tpu.dot_dimension_numbers<[1], [0], [0], [1], [0, 0, 1, 1], [], []>} : vector<8x4xf32>, vector<4x384xf32>, vector<8x384xf32> -> vector<8x384xf32>
    %27 = arith.addf %23, %26 : vector<8x384xf32>
    %28 = vector.extract_strided_slice %2 {offsets = [0, 20], sizes = [4, 384], strides = [1, 1]} : vector<4x512xf32> to vector<4x384xf32>
    %c0_16 = arith.constant 0 : index
    %c24 = arith.constant 24 : index
    %29 = vector.load %arg1[%c0_16, %c24] : memref<8x64xf32, #tpu.memory_space<vmem>>, vector<8x4xf32>
    %cst_17 = arith.constant dense<0.000000e+00> : vector<8x384xf32>
    %30 = tpu.matmul %29, %28, %cst_17 {dimension_numbers = #tpu.dot_dimension_numbers<[1], [0], [0], [1], [0, 0, 1, 1], [], []>} : vector<8x4xf32>, vector<4x384xf32>, vector<8x384xf32> -> vector<8x384xf32>
    %31 = arith.addf %27, %30 : vector<8x384xf32>
    %32 = vector.extract_strided_slice %2 {offsets = [0, 21], sizes = [4, 384], strides = [1, 1]} : vector<4x512xf32> to vector<4x384xf32>
    %c0_18 = arith.constant 0 : index
    %c28 = arith.constant 28 : index
    %33 = vector.load %arg1[%c0_18, %c28] : memref<8x64xf32, #tpu.memory_space<vmem>>, vector<8x4xf32>
    %cst_19 = arith.constant dense<0.000000e+00> : vector<8x384xf32>
    %34 = tpu.matmul %33, %32, %cst_19 {dimension_numbers = #tpu.dot_dimension_numbers<[1], [0], [0], [1], [0, 0, 1, 1], [], []>} : vector<8x4xf32>, vector<4x384xf32>, vector<8x384xf32> -> vector<8x384xf32>
    %35 = arith.addf %31, %34 : vector<8x384xf32>
    %36 = vector.extract_strided_slice %2 {offsets = [0, 36], sizes = [4, 384], strides = [1, 1]} : vector<4x512xf32> to vector<4x384xf32>
    %c0_20 = arith.constant 0 : index
    %c32 = arith.constant 32 : index
    %37 = vector.load %arg1[%c0_20, %c32] : memref<8x64xf32, #tpu.memory_space<vmem>>, vector<8x4xf32>
    %cst_21 = arith.constant dense<0.000000e+00> : vector<8x384xf32>
    %38 = tpu.matmul %37, %36, %cst_21 {dimension_numbers = #tpu.dot_dimension_numbers<[1], [0], [0], [1], [0, 0, 1, 1], [], []>} : vector<8x4xf32>, vector<4x384xf32>, vector<8x384xf32> -> vector<8x384xf32>
    %39 = arith.addf %35, %38 : vector<8x384xf32>
    %40 = vector.extract_strided_slice %2 {offsets = [0, 37], sizes = [4, 384], strides = [1, 1]} : vector<4x512xf32> to vector<4x384xf32>
    %c0_22 = arith.constant 0 : index
    %c36 = arith.constant 36 : index
    %41 = vector.load %arg1[%c0_22, %c36] : memref<8x64xf32, #tpu.memory_space<vmem>>, vector<8x4xf32>
    %cst_23 = arith.constant dense<0.000000e+00> : vector<8x384xf32>
    %42 = tpu.matmul %41, %40, %cst_23 {dimension_numbers = #tpu.dot_dimension_numbers<[1], [0], [0], [1], [0, 0, 1, 1], [], []>} : vector<8x4xf32>, vector<4x384xf32>, vector<8x384xf32> -> vector<8x384xf32>
    %43 = arith.addf %39, %42 : vector<8x384xf32>
    %44 = vector.extract_strided_slice %2 {offsets = [0, 38], sizes = [4, 384], strides = [1, 1]} : vector<4x512xf32> to vector<4x384xf32>
    %c0_24 = arith.constant 0 : index
    %c40 = arith.constant 40 : index
    %45 = vector.load %arg1[%c0_24, %c40] : memref<8x64xf32, #tpu.memory_space<vmem>>, vector<8x4xf32>
    %cst_25 = arith.constant dense<0.000000e+00> : vector<8x384xf32>
    %46 = tpu.matmul %45, %44, %cst_25 {dimension_numbers = #tpu.dot_dimension_numbers<[1], [0], [0], [1], [0, 0, 1, 1], [], []>} : vector<8x4xf32>, vector<4x384xf32>, vector<8x384xf32> -> vector<8x384xf32>
    %47 = arith.addf %43, %46 : vector<8x384xf32>
    %48 = vector.extract_strided_slice %2 {offsets = [0, 39], sizes = [4, 384], strides = [1, 1]} : vector<4x512xf32> to vector<4x384xf32>
    %c0_26 = arith.constant 0 : index
    %c44 = arith.constant 44 : index
    %49 = vector.load %arg1[%c0_26, %c44] : memref<8x64xf32, #tpu.memory_space<vmem>>, vector<8x4xf32>
    %cst_27 = arith.constant dense<0.000000e+00> : vector<8x384xf32>
    %50 = tpu.matmul %49, %48, %cst_27 {dimension_numbers = #tpu.dot_dimension_numbers<[1], [0], [0], [1], [0, 0, 1, 1], [], []>} : vector<8x4xf32>, vector<4x384xf32>, vector<8x384xf32> -> vector<8x384xf32>
    %51 = arith.addf %47, %50 : vector<8x384xf32>
    %52 = vector.extract_strided_slice %2 {offsets = [0, 54], sizes = [4, 384], strides = [1, 1]} : vector<4x512xf32> to vector<4x384xf32>
    %c0_28 = arith.constant 0 : index
    %c48 = arith.constant 48 : index
    %53 = vector.load %arg1[%c0_28, %c48] : memref<8x64xf32, #tpu.memory_space<vmem>>, vector<8x4xf32>
    %cst_29 = arith.constant dense<0.000000e+00> : vector<8x384xf32>
    %54 = tpu.matmul %53, %52, %cst_29 {dimension_numbers = #tpu.dot_dimension_numbers<[1], [0], [0], [1], [0, 0, 1, 1], [], []>} : vector<8x4xf32>, vector<4x384xf32>, vector<8x384xf32> -> vector<8x384xf32>
    %55 = arith.addf %51, %54 : vector<8x384xf32>
    %56 = vector.extract_strided_slice %2 {offsets = [0, 55], sizes = [4, 384], strides = [1, 1]} : vector<4x512xf32> to vector<4x384xf32>
    %c0_30 = arith.constant 0 : index
    %c52 = arith.constant 52 : index
    %57 = vector.load %arg1[%c0_30, %c52] : memref<8x64xf32, #tpu.memory_space<vmem>>, vector<8x4xf32>
    %cst_31 = arith.constant dense<0.000000e+00> : vector<8x384xf32>
    %58 = tpu.matmul %57, %56, %cst_31 {dimension_numbers = #tpu.dot_dimension_numbers<[1], [0], [0], [1], [0, 0, 1, 1], [], []>} : vector<8x4xf32>, vector<4x384xf32>, vector<8x384xf32> -> vector<8x384xf32>
    %59 = arith.addf %55, %58 : vector<8x384xf32>
    %60 = vector.extract_strided_slice %2 {offsets = [0, 56], sizes = [4, 384], strides = [1, 1]} : vector<4x512xf32> to vector<4x384xf32>
    %c0_32 = arith.constant 0 : index
    %c56 = arith.constant 56 : index
    %61 = vector.load %arg1[%c0_32, %c56] : memref<8x64xf32, #tpu.memory_space<vmem>>, vector<8x4xf32>
    %cst_33 = arith.constant dense<0.000000e+00> : vector<8x384xf32>
    %62 = tpu.matmul %61, %60, %cst_33 {dimension_numbers = #tpu.dot_dimension_numbers<[1], [0], [0], [1], [0, 0, 1, 1], [], []>} : vector<8x4xf32>, vector<4x384xf32>, vector<8x384xf32> -> vector<8x384xf32>
    %63 = arith.addf %59, %62 : vector<8x384xf32>
    %64 = vector.extract_strided_slice %2 {offsets = [0, 57], sizes = [4, 384], strides = [1, 1]} : vector<4x512xf32> to vector<4x384xf32>
    %c0_34 = arith.constant 0 : index
    %c60 = arith.constant 60 : index
    %65 = vector.load %arg1[%c0_34, %c60] : memref<8x64xf32, #tpu.memory_space<vmem>>, vector<8x4xf32>
    %cst_35 = arith.constant dense<0.000000e+00> : vector<8x384xf32>
    %66 = tpu.matmul %65, %64, %cst_35 {dimension_numbers = #tpu.dot_dimension_numbers<[1], [0], [0], [1], [0, 0, 1, 1], [], []>} : vector<8x4xf32>, vector<4x384xf32>, vector<8x384xf32> -> vector<8x384xf32>
    %67 = arith.addf %63, %66 : vector<8x384xf32>
    %c0_36 = arith.constant 0 : index
    %c0_37 = arith.constant 0 : index
    %68 = vector.load %arg2[%c0_36, %c0_37] : memref<8x1xf32, #tpu.memory_space<vmem>>, vector<8x1xf32>
    %69 = vector.broadcast %68 : vector<8x1xf32> to vector<8x384xf32>
    %70 = arith.addf %67, %69 : vector<8x384xf32>
    %c0_38 = arith.constant 0 : index
    %c0_39 = arith.constant 0 : index
    %71 = vector.load %arg5[%c0_38, %c0_39] : memref<8x384xf32, #tpu.memory_space<vmem>>, vector<8x384xf32>
    tpu.vector_store %arg5[%c0_38, %c0_39], %70 {strides = array<i32>} : memref<8x384xf32, #tpu.memory_space<vmem>>, vector<8x384xf32>,
    return
  }
  func.func @transform_0(%arg0: i32) -> (i32, i32) {
    %c0_i32 = arith.constant 0 : i32
    %c0_i32_0 = arith.constant 0 : i32
    %c0_i32_1 = arith.constant 0 : i32
    return %c0_i32, %c0_i32_0 : i32, i32
  }
  func.func @transform_1(%arg0: i32) -> (i32, i32) {
    %c0_i32 = arith.constant 0 : i32
    %c0_i32_0 = arith.constant 0 : i32
    %c0_i32_1 = arith.constant 0 : i32
    return %c0_i32, %c0_i32_0 : i32, i32
  }
  func.func @transform_2(%arg0: i32) -> (i32, i32) {
    %c0_i32 = arith.constant 0 : i32
    %c0_i32_0 = arith.constant 0 : i32
    return %c0_i32, %arg0 : i32, i32
  }
  func.func @transform_3(%arg0: i32) -> (i32, i32) {
    %c1_i32 = arith.constant 1 : i32
    %0 = arith.addi %arg0, %c1_i32 : i32
    %c3_i32 = arith.constant 3 : i32
    %1 = arith.muli %0, %c3_i32 : i32
    %c0_i32 = arith.constant 0 : i32
    %c0_i32_0 = arith.constant 0 : i32
    return %c0_i32, %1 : i32, i32
  }
  func.func @transform_4(%arg0: i32) -> (i32, i32) {
    %c0_i32 = arith.constant 0 : i32
    %c0_i32_0 = arith.constant 0 : i32
    return %c0_i32, %arg0 : i32, i32
  }
}

</mosaic_0001>

<llo_original>
// kernel: lora_conv2d_forward.1
$region0: #{lora_conv2d_forward.1}
  #allocation0 [shape = 'u32[]', space=smem, size = 0x4, offset = 0x4, fixed_abs, tag = 'smem constant byte address 0x4 - core index']
  #allocation1 [shape = 'u32[72,128]{1,0:T(1,128)}', space=vmem, size = 0x9000, scoped, tag = 'internal scratch']
  %s0 = inlined_call_operand.vmem [shape: f32[8,64], index: 0, kind: input, shape index: {}]
  %s1 = inlined_call_operand.vmem [shape: f32[8,1], index: 1, kind: input, shape index: {}]
  %s2 = inlined_call_operand.vmem [shape: f32[4,896], index: 2, kind: input, shape index: {}, may-alias: {2,3}]
  %s3 = inlined_call_operand.vmem [shape: f32[4,896], index: 3, kind: input, shape index: {}, may-alias: {2,3}]
  %s4 = inlined_call_operand.vmem [shape: f32[8,768], index: 4, kind: output, shape index: {}]
  %s5 = sld [smem:[#allocation0]]
  $region49: #{lora_conv2d_forward.1} parent=0
    _
  %s7 = ssub.s32 1, %s5
  %s8 = scalar_select 0, %s7, %s5
  loop: start=0, step=1, limit=4
  $region2: #{lora_conv2d_forward.1} parent=0 // loop_pre_header
    _
  $region3: #{lora_conv2d_forward.1} parent=0 // loop_header
    %s10 = sphi 0, %s14
    %p11 = scmp.ge.s32.totalorder %s10, 4
    %s18 = sphi 0, %s18
    %s20 = sphi 0, %s18
    %s21 = sphi 0, %s20
    %s35 = sphi 0, %s21
    %s39 = sphi 0, %s39
    %s41 = sphi 0, %s39
    %s42 = sphi 0, %s41
    %s56 = sphi 0, %s42
    %s62 = sphi 0, %s64
    %s65 = sphi 0, %s62
    %s66 = sphi 0, %s65
    %s82 = sphi 0, %s66
    %s92 = sphi 0, %s94
    %s95 = sphi 0, %s92
    %s96 = sphi 0, %s95
    %s112 = sphi 0, %s96
    %s118 = sphi 0, %s120
    %s121 = sphi 0, %s118
    %s122 = sphi 0, %s121
    %s138 = sphi 0, %s122
  $region4: #{lora_conv2d_forward.1} parent=0 // loop_header_branch
    %13 = sbr.rel (%p11) target = $region8
  $region5: #{lora_conv2d_forward.1} parent=0 // loop_body
    %s15 = ssub.s32 %s10, 1
    %s16 = ssub.s32 %s10, 2
    %s17 = sadd.s32 %s10, 1
    %s19 = sadd.s32 %s18, 1
    %p22 = scmp.eq.s32.totalorder %s10, 1
    %p23 = scmp.ne.s32.totalorder %s18, %s20
    %p24 = scmp.eq.s32.totalorder %s10, 0
    %p25 = por %p23, %p24
    %p26 = scmp.ne.s32.totalorder %s18, %s20
    %p27 = scmp.eq.s32.totalorder %s15, 1
    %p28 = por %p26, %p27
    %p29 = scmp.ne.s32.totalorder %s20, %s21
    %p30 = scmp.eq.s32.totalorder %s15, 0
    %p31 = por %p29, %p30
    %p32 = scmp.ne.s32.totalorder %s20, %s21
    %p33 = scmp.eq.s32.totalorder %s16, 1
    %p34 = por %p32, %p33
    %p36 = scmp.ne.s32.totalorder %s21, %s35
    %p37 = scmp.eq.s32.totalorder %s16, 0
    %p38 = por %p36, %p37
    %s40 = sadd.s32 %s39, 1
    %p43 = scmp.eq.s32.totalorder %s10, 1
    %p44 = scmp.ne.s32.totalorder %s39, %s41
    %p45 = scmp.eq.s32.totalorder %s10, 0
    %p46 = por %p44, %p45
    %p47 = scmp.ne.s32.totalorder %s39, %s41
    %p48 = scmp.eq.s32.totalorder %s15, 1
    %p49 = por %p47, %p48
    %p50 = scmp.ne.s32.totalorder %s41, %s42
    %p51 = scmp.eq.s32.totalorder %s15, 0
    %p52 = por %p50, %p51
    %p53 = scmp.ne.s32.totalorder %s41, %s42
    %p54 = scmp.eq.s32.totalorder %s16, 1
    %p55 = por %p53, %p54
    %p57 = scmp.ne.s32.totalorder %s42, %s56
    %p58 = scmp.eq.s32.totalorder %s16, 0
    %p59 = por %p57, %p58
    %s60 = ssub.s32 %s10, %s17
    %p61 = scmp.eq.s32.totalorder %s60, 0
    %s63 = sadd.s32 %s62, 1
    %s64 = scalar_select %p61, %s62, %s63
    %p67 = pneg %p61
    %p68 = scmp.eq.s32.totalorder %s10, 1
    %p69 = por %p67, %p68
    %p70 = scmp.ne.s32.totalorder %s62, %s65
    %p71 = scmp.eq.s32.totalorder %s10, 0
    %p72 = por %p70, %p71
    %p73 = scmp.ne.s32.totalorder %s62, %s65
    %p74 = scmp.eq.s32.totalorder %s15, 1
    %p75 = por %p73, %p74
    %p76 = scmp.ne.s32.totalorder %s65, %s66
    %p77 = scmp.eq.s32.totalorder %s15, 0
    %p78 = por %p76, %p77
    %p79 = scmp.ne.s32.totalorder %s65, %s66
    %p80 = scmp.eq.s32.totalorder %s16, 1
    %p81 = por %p79, %p80
    %p83 = scmp.ne.s32.totalorder %s66, %s82
    %p84 = scmp.eq.s32.totalorder %s16, 0
    %p85 = por %p83, %p84
    %s86 = sadd.s32 %s10, 1
    %s87 = smul.u32 %s86, 3
    %s88 = sadd.s32 %s17, 1
    %s89 = smul.u32 %s88, 3
    %s90 = ssub.s32 %s87, %s89
    %p91 = scmp.eq.s32.totalorder %s90, 0
    %s93 = sadd.s32 %s92, 1
    %s94 = scalar_select %p91, %s92, %s93
    %p97 = pneg %p91
    %p98 = scmp.eq.s32.totalorder %s10, 1
    %p99 = por %p97, %p98
    %p100 = scmp.ne.s32.totalorder %s92, %s95
    %p101 = scmp.eq.s32.totalorder %s10, 0
    %p102 = por %p100, %p101
    %p103 = scmp.ne.s32.totalorder %s92, %s95
    %p104 = scmp.eq.s32.totalorder %s15, 1
    %p105 = por %p103, %p104
    %p106 = scmp.ne.s32.totalorder %s95, %s96
    %p107 = scmp.eq.s32.totalorder %s15, 0
    %p108 = por %p106, %p107
    %p109 = scmp.ne.s32.totalorder %s95, %s96
    %p110 = scmp.eq.s32.totalorder %s16, 1
    %p111 = por %p109, %p110
    %p113 = scmp.ne.s32.totalorder %s96, %s112
    %p114 = scmp.eq.s32.totalorder %s16, 0
    %p115 = por %p113, %p114
    %s116 = ssub.s32 %s10, %s17
    %p117 = scmp.eq.s32.totalorder %s116, 0
    %s119 = sadd.s32 %s118, 1
    %s120 = scalar_select %p117, %s118, %s119
    %p123 = pneg %p117
    %p124 = scmp.eq.s32.totalorder %s10, 1
    %p125 = por %p123, %p124
    %p126 = scmp.ne.s32.totalorder %s118, %s121
    %p127 = scmp.eq.s32.totalorder %s10, 0
    %p128 = por %p126, %p127
    %p129 = scmp.ne.s32.totalorder %s118, %s121
    %p130 = scmp.eq.s32.totalorder %s15, 1
    %p131 = por %p129, %p130
    %p132 = scmp.ne.s32.totalorder %s121, %s122
    %p133 = scmp.eq.s32.totalorder %s15, 0
    %p134 = por %p132, %p133
    %p135 = scmp.ne.s32.totalorder %s121, %s122
    %p136 = scmp.eq.s32.totalorder %s16, 1
    %p137 = por %p135, %p136
    %p139 = scmp.ne.s32.totalorder %s122, %s138
    %p140 = scmp.eq.s32.totalorder %s16, 0
    %p141 = por %p139, %p140
    %p142 = scmp.le.s32.totalorder 1, %s10
    %p143 = scmp.lt.s32.totalorder %s10, 3
    %p144 = pnand %p142, %p143
    %p145 = pneg %p144
    // Predicated region
    $region9: #{lora_conv2d_forward.1} parent=5 // pred_check
      _
    $region10: #{lora_conv2d_forward.1} parent=5 // pred_check_branch
      %147 = sbr.rel (%p144) target = $region12
    $region11: #{lora_conv2d_forward.1} parent=5 // pred_region
      %s148 = ssub.s32 %s10, 1
      // Predicated region
      $region13: #{lora_conv2d_forward.1} parent=11 // pred_check
        %p149 = pneg %p31
      $region14: #{lora_conv2d_forward.1} parent=11 // pred_check_branch
        %151 = sbr.rel (%p149) target = $region16
      $region15: #{lora_conv2d_forward.1} parent=11 // pred_region
        _
      $region16: #{lora_conv2d_forward.1} parent=11 // pred_fallthru
        _
      // Predicated region
      $region17: #{lora_conv2d_forward.1} parent=11 // pred_check
        %p152 = pneg %p52
      $region18: #{lora_conv2d_forward.1} parent=11 // pred_check_branch
        %154 = sbr.rel (%p152) target = $region20
      $region19: #{lora_conv2d_forward.1} parent=11 // pred_region
        _
      $region20: #{lora_conv2d_forward.1} parent=11 // pred_fallthru
        _
    $region12: #{lora_conv2d_forward.1} parent=5 // pred_fallthru
      _
    %p155 = scmp.lt.s32.totalorder %s10, 2
    // Predicated region
    $region21: #{lora_conv2d_forward.1} parent=5 // pred_check
      %p156 = pneg %p155
    $region22: #{lora_conv2d_forward.1} parent=5 // pred_check_branch
      %158 = sbr.rel (%p156) target = $region24
    $region23: #{lora_conv2d_forward.1} parent=5 // pred_region
      // Predicated region
      $region25: #{lora_conv2d_forward.1} parent=23 // pred_check
        %p159 = pneg %p72
      $region26: #{lora_conv2d_forward.1} parent=23 // pred_check_branch
        %161 = sbr.rel (%p159) target = $region28
      $region27: #{lora_conv2d_forward.1} parent=23 // pred_region
        %s162 = smul.u32 3, %s10
        %s163 = ssub.s32 7, %s162
        %p164 = scmp.lt.s32.totalorder %s163, 3
        %s165 = scalar_select %p164, %s163, 3
        %s166 = smul.u32 4, %s165
        %p167 = scmp.lt.s32.totalorder %s162, 6
        %s168 = scalar_select %p167, %s162, 6
        %s169 = smul.addr %s168, 4
        %s170 = scalar_lea.vmem %s2, %s169
        %s171 = smul.u32 3, %s10
        %s172 = ssub.s32 7, %s171
        %p173 = scmp.lt.s32.totalorder %s172, 3
        %s174 = scalar_select %p173, %s172, 3
        %s175 = smul.u32 4, %s174
      $region28: #{lora_conv2d_forward.1} parent=23 // pred_fallthru
        _
      // Predicated region
      $region29: #{lora_conv2d_forward.1} parent=23 // pred_check
        %p176 = pneg %p102
      $region30: #{lora_conv2d_forward.1} parent=23 // pred_check_branch
        %178 = sbr.rel (%p176) target = $region32
      $region31: #{lora_conv2d_forward.1} parent=23 // pred_region
        %s179 = sadd.s32 %s10, 1
        %s180 = smul.u32 %s179, 3
        %p181 = scmp.lt.s32.totalorder %s180, 6
        %s182 = scalar_select %p181, %s180, 6
        %s183 = smul.addr %s182, 4
        %s184 = scalar_lea.vmem %s3, %s183
        %s185 = sadd.s32 %s10, 1
        %s186 = smul.u32 %s185, 3
      $region32: #{lora_conv2d_forward.1} parent=23 // pred_fallthru
        _
    $region24: #{lora_conv2d_forward.1} parent=5 // pred_fallthru
      _
    %p187 = scmp.le.s32.totalorder 1, %s10
    %p188 = scmp.lt.s32.totalorder %s10, 3
    %p189 = pnand %p187, %p188
    %p190 = pneg %p189
    // Predicated region
    $region33: #{lora_conv2d_forward.1} parent=5 // pred_check
      _
    $region34: #{lora_conv2d_forward.1} parent=5 // pred_check_branch
      %192 = sbr.rel (%p189) target = $region36
    $region35: #{lora_conv2d_forward.1} parent=5 // pred_region
      %s193 = ssub.s32 %s10, 1
      %p194 = pneg %p31
      %p195 = pneg %p28
      %p196 = pneg %p52
      %p197 = pneg %p49
      %s198 = smul.u32 3, %s15
      %s199 = ssub.s32 7, %s198
      %p200 = scmp.lt.s32.totalorder %s199, 3
      %s201 = scalar_select %p200, %s199, 3
      %s202 = smul.u32 4, %s201
      %p203 = scmp.lt.s32.totalorder %s198, 6
      %s204 = scalar_select %p203, %s198, 6
      %s205 = smul.addr %s204, 4
      %s206 = scalar_lea.vmem %s2, %s205
      %p207 = pneg %p78
      %p208 = pneg %p75
      %s209 = sadd.s32 %s15, 1
      %s210 = smul.u32 %s209, 3
      %p211 = scmp.lt.s32.totalorder %s210, 6
      %s212 = scalar_select %p211, %s210, 6
      %s213 = smul.addr %s212, 4
      %s214 = scalar_lea.vmem %s3, %s213
      %p215 = pneg %p108
      %p216 = pneg %p105
      %p217 = pneg %p134
      %p218 = pneg %p131
      %s219 = smul.u32 3, %s15
      %p220 = scmp.lt.s32.totalorder %s219, 5
      %s221 = scalar_select %p220, %s219, 5
      %s222 = smul.addr %s221, 8
      %s223 = scalar_lea.vmem %s4, %s222
      %s224 = smul.u32 3, %s15
      %s225 = ssub.s32 7, %s224
      %p226 = scmp.lt.s32.totalorder %s225, 3
      %s227 = scalar_select %p226, %s225, 3
      %s228 = smul.u32 4, %s227
      %p229 = scmp.lt.s32.totalorder %s224, 6
      %s230 = scalar_select %p229, %s224, 6
      %s231 = smul.addr %s230, 4
      %s232 = scalar_lea.vmem %s2, %s231
      %s233 = smul.u32 3, %s15
      %s234 = ssub.s32 7, %s233
      %p235 = scmp.lt.s32.totalorder %s234, 3
      %s236 = scalar_select %p235, %s234, 3
      %s237 = smul.u32 4, %s236
      %s238 = sadd.s32 %s15, 1
      %s239 = smul.u32 %s238, 3
      %p240 = scmp.lt.s32.totalorder %s239, 6
      %s241 = scalar_select %p240, %s239, 6
      %s242 = smul.addr %s241, 4
      %s243 = scalar_lea.vmem %s3, %s242
      %s244 = sadd.s32 %s15, 1
      %s245 = smul.u32 %s244, 3
      %s246 = smul.u32 3, %s15
      %p247 = scmp.lt.s32.totalorder %s246, 5
      %s248 = scalar_select %p247, %s246, 5
      %s249 = smul.addr %s248, 8
      %s250 = scalar_lea.vmem %s4, %s249
      %s251 = smul.u32 3, %s15
      %v252 = vld [vmem:[%s232] sm:$0xff]
      %v253 = vld [vmem:[%s232 + $0x8] sm:$0xf]
      %v254 = vld [vmem:[%s243] sm:$0xf]
      %257 = vst [vmem:[#allocation1] ss:$2 sm:$0xff] %v252
      %s258 = scalar_lea.vmem [#allocation1], 16
      %259 = vst [vmem:[%s258] ss:$2 sm:$0xff] %v253
      %v260 = vld.sshfl [vmem:[#allocation1] sm:$0xff pattern:$0x75316420]
      %v261 = vld.sshfl [vmem:[#allocation1 + $0x8] sm:$0xff pattern:$0x75316420]
      %v262 = vld.sshfl [vmem:[#allocation1 + $0x10] sm:$0xff pattern:$0x75316420]
      %v263 = vld [vmem:[%s0] sm:$0xff]
      %265 = vrot.lane.b32.xlu0 %v263, 124
      %v266 = vpop.permute.xlu0 %265
      %268 = vrot.lane.b32.xlu0 %v260, 127
      %v269 = vpop.permute.xlu0 %268
      %270 = vrot.lane.b32.xlu0 %v261, 127
      %v271 = vpop.permute.xlu0 %270
      %272 = vrot.lane.b32.xlu0 %v262, 127
      %v273 = vpop.permute.xlu0 %272
      %274 = vrot.lane.b32.xlu0 %v254, 127
      %v275 = vpop.permute.xlu0 %274
      %vm276 = vcmask 1039360
      %v277 = vsel %vm276, %v269, %v271
      %v278 = vsel %vm276, %v271, %v273
      %v279 = vsel %vm276, %v273, %v275
      %vm280 = vcmask 31744
      %v281 = vsel %vm280, %v266, 0
      %vm283 = vcmask 1043456
      %v284 = vsel %vm283, %v277, 0
      %v286 = vsel %vm283, %v278, 0
      %v288 = vsel %vm283, %v279, 0
      %290 = vmatpush.msra.mxu0 0.0
      %291 = vmatpush.msra.mxu0 0.0
      %292 = vmatpush.msra.mxu0 0.0
      %293 = vmatpush.msra.mxu0 0.0
      %294 = vmatpush.msra.mxu0 0.0
      %295 = vmatpush.msra.mxu0 0.0
      %296 = vmatpush.msra.mxu0 0.0
      %297 = vmatpush.msra.mxu0 0.0
      %298 = vmatpush.msra.mxu0 0.0
      %299 = vmatpush.msra.mxu0 0.0
      %300 = vmatpush.msra.mxu0 0.0
      %301 = vmatpush.msra.mxu0 0.0
      %302 = vmatpush.msra.mxu0 0.0
      %303 = vmatpush.msra.mxu0 0.0
      %304 = vmatpush.msra.mxu0 0.0
      %305 = vmatpush.msra.mxu0 %v284
      %306 = vmatmul.f32.gmra.mxu0 %v281
      %v307 = vpop.f32.mrf.mxu0
      %v308 = vadd.f32 0.0, %v307
      %309 = vdwg.mxu0
      %310 = vmatpush.msra.mxu0 0.0
      %311 = vmatpush.msra.mxu0 0.0
      %312 = vmatpush.msra.mxu0 0.0
      %313 = vmatpush.msra.mxu0 0.0
      %314 = vmatpush.msra.mxu0 0.0
      %315 = vmatpush.msra.mxu0 0.0
      %316 = vmatpush.msra.mxu0 0.0
      %317 = vmatpush.msra.mxu0 0.0
      %318 = vmatpush.msra.mxu0 0.0
      %319 = vmatpush.msra.mxu0 0.0
      %320 = vmatpush.msra.mxu0 0.0
      %321 = vmatpush.msra.mxu0 0.0
      %322 = vmatpush.msra.mxu0 0.0
      %323 = vmatpush.msra.mxu0 0.0
      %324 = vmatpush.msra.mxu0 0.0
      %325 = vmatpush.msra.mxu0 %v286
      %326 = vmatmul.f32.gmra.mxu0 %v281
      %v327 = vpop.f32.mrf.mxu0
      %v328 = vadd.f32 0.0, %v327
      %329 = vdwg.mxu0
      %330 = vmatpush.msra.mxu0 0.0
      %331 = vmatpush.msra.mxu0 0.0
      %332 = vmatpush.msra.mxu0 0.0
      %333 = vmatpush.msra.mxu0 0.0
      %334 = vmatpush.msra.mxu0 0.0
      %335 = vmatpush.msra.mxu0 0.0
      %336 = vmatpush.msra.mxu0 0.0
      %337 = vmatpush.msra.mxu0 0.0
      %338 = vmatpush.msra.mxu0 0.0
      %339 = vmatpush.msra.mxu0 0.0
      %340 = vmatpush.msra.mxu0 0.0
      %341 = vmatpush.msra.mxu0 0.0
      %342 = vmatpush.msra.mxu0 0.0
      %343 = vmatpush.msra.mxu0 0.0
      %344 = vmatpush.msra.mxu0 0.0
      %345 = vmatpush.msra.mxu0 %v288
      %346 = vmatmul.f32.gmra.mxu0 %v281
      %v347 = vpop.f32.mrf.mxu0
      %v348 = vadd.f32 0.0, %v347
      %349 = vdwg.mxu0
      %v350 = vsel %vm280, %v263, 0
      %v352 = vsel %vm283, %v260, 0
      %v354 = vsel %vm283, %v261, 0
      %v356 = vsel %vm283, %v262, 0
      %358 = vmatpush.msra.mxu0 0.0
      %359 = vmatpush.msra.mxu0 0.0
      %360 = vmatpush.msra.mxu0 0.0
      %361 = vmatpush.msra.mxu0 0.0
      %362 = vmatpush.msra.mxu0 0.0
      %363 = vmatpush.msra.mxu0 0.0
      %364 = vmatpush.msra.mxu0 0.0
      %365 = vmatpush.msra.mxu0 0.0
      %366 = vmatpush.msra.mxu0 0.0
      %367 = vmatpush.msra.mxu0 0.0
      %368 = vmatpush.msra.mxu0 0.0
      %369 = vmatpush.msra.mxu0 0.0
      %370 = vmatpush.msra.mxu0 0.0
      %371 = vmatpush.msra.mxu0 0.0
      %372 = vmatpush.msra.mxu0 0.0
      %373 = vmatpush.msra.mxu0 %v352
      %374 = vmatmul.f32.gmra.mxu0 %v350
      %v375 = vpop.f32.mrf.mxu0
      %v376 = vadd.f32 %v308, %v375
      %377 = vdwg.mxu0
      %378 = vmatpush.msra.mxu0 0.0
      %379 = vmatpush.msra.mxu0 0.0
      %380 = vmatpush.msra.mxu0 0.0
      %381 = vmatpush.msra.mxu0 0.0
      %382 = vmatpush.msra.mxu0 0.0
      %383 = vmatpush.msra.mxu0 0.0
      %384 = vmatpush.msra.mxu0 0.0
      %385 = vmatpush.msra.mxu0 0.0
      %386 = vmatpush.msra.mxu0 0.0
      %387 = vmatpush.msra.mxu0 0.0
      %388 = vmatpush.msra.mxu0 0.0
      %389 = vmatpush.msra.mxu0 0.0
      %390 = vmatpush.msra.mxu0 0.0
      %391 = vmatpush.msra.mxu0 0.0
      %392 = vmatpush.msra.mxu0 0.0
      %393 = vmatpush.msra.mxu0 %v354
      %394 = vmatmul.f32.gmra.mxu0 %v350
      %v395 = vpop.f32.mrf.mxu0
      %v396 = vadd.f32 %v328, %v395
      %397 = vdwg.mxu0
      %398 = vmatpush.msra.mxu0 0.0
      %399 = vmatpush.msra.mxu0 0.0
      %400 = vmatpush.msra.mxu0 0.0
      %401 = vmatpush.msra.mxu0 0.0
      %402 = vmatpush.msra.mxu0 0.0
      %403 = vmatpush.msra.mxu0 0.0
      %404 = vmatpush.msra.mxu0 0.0
      %405 = vmatpush.msra.mxu0 0.0
      %406 = vmatpush.msra.mxu0 0.0
      %407 = vmatpush.msra.mxu0 0.0
      %408 = vmatpush.msra.mxu0 0.0
      %409 = vmatpush.msra.mxu0 0.0
      %410 = vmatpush.msra.mxu0 0.0
      %411 = vmatpush.msra.mxu0 0.0
      %412 = vmatpush.msra.mxu0 0.0
      %413 = vmatpush.msra.mxu0 %v356
      %414 = vmatmul.f32.gmra.mxu0 %v350
      %v415 = vpop.f32.mrf.mxu0
      %v416 = vadd.f32 %v348, %v415
      %417 = vdwg.mxu0
      %418 = vrot.lane.b32.xlu0 %v263, 120
      %v419 = vpop.permute.xlu0 %418
      %420 = vrot.lane.b32.xlu0 %v260, 126
      %v421 = vpop.permute.xlu0 %420
      %422 = vrot.lane.b32.xlu0 %v261, 126
      %v423 = vpop.permute.xlu0 %422
      %424 = vrot.lane.b32.xlu0 %v262, 126
      %v425 = vpop.permute.xlu0 %424
      %426 = vrot.lane.b32.xlu0 %v254, 126
      %v427 = vpop.permute.xlu0 %426
      %vm428 = vcmask 1031168
      %v429 = vsel %vm428, %v421, %v423
      %v430 = vsel %vm428, %v423, %v425
      %v431 = vsel %vm428, %v425, %v427
      %v432 = vsel %vm280, %v419, 0
      %v434 = vsel %vm283, %v429, 0
      %v436 = vsel %vm283, %v430, 0
      %v438 = vsel %vm283, %v431, 0
      %440 = vmatpush.msra.mxu0 0.0
      %441 = vmatpush.msra.mxu0 0.0
      %442 = vmatpush.msra.mxu0 0.0
      %443 = vmatpush.msra.mxu0 0.0
      %444 = vmatpush.msra.mxu0 0.0
      %445 = vmatpush.msra.mxu0 0.0
      %446 = vmatpush.msra.mxu0 0.0
      %447 = vmatpush.msra.mxu0 0.0
      %448 = vmatpush.msra.mxu0 0.0
      %449 = vmatpush.msra.mxu0 0.0
      %450 = vmatpush.msra.mxu0 0.0
      %451 = vmatpush.msra.mxu0 0.0
      %452 = vmatpush.msra.mxu0 0.0
      %453 = vmatpush.msra.mxu0 0.0
      %454 = vmatpush.msra.mxu0 0.0
      %455 = vmatpush.msra.mxu0 %v434
      %456 = vmatmul.f32.gmra.mxu0 %v432
      %v457 = vpop.f32.mrf.mxu0
      %v458 = vadd.f32 0.0, %v457
      %459 = vdwg.mxu0
      %460 = vmatpush.msra.mxu0 0.0
      %461 = vmatpush.msra.mxu0 0.0
      %462 = vmatpush.msra.mxu0 0.0
      %463 = vmatpush.msra.mxu0 0.0
      %464 = vmatpush.msra.mxu0 0.0
      %465 = vmatpush.msra.mxu0 0.0
      %466 = vmatpush.msra.mxu0 0.0
      %467 = vmatpush.msra.mxu0 0.0
      %468 = vmatpush.msra.mxu0 0.0
      %469 = vmatpush.msra.mxu0 0.0
      %470 = vmatpush.msra.mxu0 0.0
      %471 = vmatpush.msra.mxu0 0.0
      %472 = vmatpush.msra.mxu0 0.0
      %473 = vmatpush.msra.mxu0 0.0
      %474 = vmatpush.msra.mxu0 0.0
      %475 = vmatpush.msra.mxu0 %v436
      %476 = vmatmul.f32.gmra.mxu0 %v432
      %v477 = vpop.f32.mrf.mxu0
      %v478 = vadd.f32 0.0, %v477
      %479 = vdwg.mxu0
      %480 = vmatpush.msra.mxu0 0.0
      %481 = vmatpush.msra.mxu0 0.0
      %482 = vmatpush.msra.mxu0 0.0
      %483 = vmatpush.msra.mxu0 0.0
      %484 = vmatpush.msra.mxu0 0.0
      %485 = vmatpush.msra.mxu0 0.0
      %486 = vmatpush.msra.mxu0 0.0
      %487 = vmatpush.msra.mxu0 0.0
      %488 = vmatpush.msra.mxu0 0.0
      %489 = vmatpush.msra.mxu0 0.0
      %490 = vmatpush.msra.mxu0 0.0
      %491 = vmatpush.msra.mxu0 0.0
      %492 = vmatpush.msra.mxu0 0.0
      %493 = vmatpush.msra.mxu0 0.0
      %494 = vmatpush.msra.mxu0 0.0
      %495 = vmatpush.msra.mxu0 %v438
      %496 = vmatmul.f32.gmra.mxu0 %v432
      %v497 = vpop.f32.mrf.mxu0
      %v498 = vadd.f32 0.0, %v497
      %499 = vdwg.mxu0
      %v500 = vadd.f32 %v376, %v458
      %v501 = vadd.f32 %v396, %v478
      %v502 = vadd.f32 %v416, %v498
      %503 = vrot.lane.b32.xlu0 %v263, 116
      %v504 = vpop.permute.xlu0 %503
      %505 = vrot.lane.b32.xlu0 %v260, 125
      %v506 = vpop.permute.xlu0 %505
      %507 = vrot.lane.b32.xlu0 %v261, 125
      %v508 = vpop.permute.xlu0 %507
      %509 = vrot.lane.b32.xlu0 %v262, 125
      %v510 = vpop.permute.xlu0 %509
      %511 = vrot.lane.b32.xlu0 %v254, 125
      %v512 = vpop.permute.xlu0 %511
      %vm513 = vcmask 1022976
      %v514 = vsel %vm513, %v506, %v508
      %v515 = vsel %vm513, %v508, %v510
      %v516 = vsel %vm513, %v510, %v512
      %v517 = vsel %vm280, %v504, 0
      %v519 = vsel %vm283, %v514, 0
      %v521 = vsel %vm283, %v515, 0
      %v523 = vsel %vm283, %v516, 0
      %525 = vmatpush.msra.mxu0 0.0
      %526 = vmatpush.msra.mxu0 0.0
      %527 = vmatpush.msra.mxu0 0.0
      %528 = vmatpush.msra.mxu0 0.0
      %529 = vmatpush.msra.mxu0 0.0
      %530 = vmatpush.msra.mxu0 0.0
      %531 = vmatpush.msra.mxu0 0.0
      %532 = vmatpush.msra.mxu0 0.0
      %533 = vmatpush.msra.mxu0 0.0
      %534 = vmatpush.msra.mxu0 0.0
      %535 = vmatpush.msra.mxu0 0.0
      %536 = vmatpush.msra.mxu0 0.0
      %537 = vmatpush.msra.mxu0 0.0
      %538 = vmatpush.msra.mxu0 0.0
      %539 = vmatpush.msra.mxu0 0.0
      %540 = vmatpush.msra.mxu0 %v519
      %541 = vmatmul.f32.gmra.mxu0 %v517
      %v542 = vpop.f32.mrf.mxu0
      %v543 = vadd.f32 0.0, %v542
      %544 = vdwg.mxu0
      %545 = vmatpush.msra.mxu0 0.0
      %546 = vmatpush.msra.mxu0 0.0
      %547 = vmatpush.msra.mxu0 0.0
      %548 = vmatpush.msra.mxu0 0.0
      %549 = vmatpush.msra.mxu0 0.0
      %550 = vmatpush.msra.mxu0 0.0
      %551 = vmatpush.msra.mxu0 0.0
      %552 = vmatpush.msra.mxu0 0.0
      %553 = vmatpush.msra.mxu0 0.0
      %554 = vmatpush.msra.mxu0 0.0
      %555 = vmatpush.msra.mxu0 0.0
      %556 = vmatpush.msra.mxu0 0.0
      %557 = vmatpush.msra.mxu0 0.0
      %558 = vmatpush.msra.mxu0 0.0
      %559 = vmatpush.msra.mxu0 0.0
      %560 = vmatpush.msra.mxu0 %v521
      %561 = vmatmul.f32.gmra.mxu0 %v517
      %v562 = vpop.f32.mrf.mxu0
      %v563 = vadd.f32 0.0, %v562
      %564 = vdwg.mxu0
      %565 = vmatpush.msra.mxu0 0.0
      %566 = vmatpush.msra.mxu0 0.0
      %567 = vmatpush.msra.mxu0 0.0
      %568 = vmatpush.msra.mxu0 0.0
      %569 = vmatpush.msra.mxu0 0.0
      %570 = vmatpush.msra.mxu0 0.0
      %571 = vmatpush.msra.mxu0 0.0
      %572 = vmatpush.msra.mxu0 0.0
      %573 = vmatpush.msra.mxu0 0.0
      %574 = vmatpush.msra.mxu0 0.0
      %575 = vmatpush.msra.mxu0 0.0
      %576 = vmatpush.msra.mxu0 0.0
      %577 = vmatpush.msra.mxu0 0.0
      %578 = vmatpush.msra.mxu0 0.0
      %579 = vmatpush.msra.mxu0 0.0
      %580 = vmatpush.msra.mxu0 %v523
      %581 = vmatmul.f32.gmra.mxu0 %v517
      %v582 = vpop.f32.mrf.mxu0
      %v583 = vadd.f32 0.0, %v582
      %584 = vdwg.mxu0
      %v585 = vadd.f32 %v500, %v543
      %v586 = vadd.f32 %v501, %v563
      %v587 = vadd.f32 %v502, %v583
      %588 = vrot.lane.b32.xlu0 %v263, 112
      %v589 = vpop.permute.xlu0 %588
      %590 = vrot.lane.b32.xlu0 %v260, 110
      %v591 = vpop.permute.xlu0 %590
      %592 = vrot.lane.b32.xlu0 %v261, 110
      %v593 = vpop.permute.xlu0 %592
      %594 = vrot.lane.b32.xlu0 %v262, 110
      %v595 = vpop.permute.xlu0 %594
      %596 = vrot.lane.b32.xlu0 %v254, 110
      %v597 = vpop.permute.xlu0 %596
      %vm598 = vcmask 900096
      %v599 = vsel %vm598, %v591, %v593
      %v600 = vsel %vm598, %v593, %v595
      %v601 = vsel %vm598, %v595, %v597
      %v602 = vsel %vm280, %v589, 0
      %v604 = vsel %vm283, %v599, 0
      %v606 = vsel %vm283, %v600, 0
      %v608 = vsel %vm283, %v601, 0
      %610 = vmatpush.msra.mxu0 0.0
      %611 = vmatpush.msra.mxu0 0.0
      %612 = vmatpush.msra.mxu0 0.0
      %613 = vmatpush.msra.mxu0 0.0
      %614 = vmatpush.msra.mxu0 0.0
      %615 = vmatpush.msra.mxu0 0.0
      %616 = vmatpush.msra.mxu0 0.0
      %617 = vmatpush.msra.mxu0 0.0
      %618 = vmatpush.msra.mxu0 0.0
      %619 = vmatpush.msra.mxu0 0.0
      %620 = vmatpush.msra.mxu0 0.0
      %621 = vmatpush.msra.mxu0 0.0
      %622 = vmatpush.msra.mxu0 0.0
      %623 = vmatpush.msra.mxu0 0.0
      %624 = vmatpush.msra.mxu0 0.0
      %625 = vmatpush.msra.mxu0 %v604
      %626 = vmatmul.f32.gmra.mxu0 %v602
      %v627 = vpop.f32.mrf.mxu0
      %v628 = vadd.f32 0.0, %v627
      %629 = vdwg.mxu0
      %630 = vmatpush.msra.mxu0 0.0
      %631 = vmatpush.msra.mxu0 0.0
      %632 = vmatpush.msra.mxu0 0.0
      %633 = vmatpush.msra.mxu0 0.0
      %634 = vmatpush.msra.mxu0 0.0
      %635 = vmatpush.msra.mxu0 0.0
      %636 = vmatpush.msra.mxu0 0.0
      %637 = vmatpush.msra.mxu0 0.0
      %638 = vmatpush.msra.mxu0 0.0
      %639 = vmatpush.msra.mxu0 0.0
      %640 = vmatpush.msra.mxu0 0.0
      %641 = vmatpush.msra.mxu0 0.0
      %642 = vmatpush.msra.mxu0 0.0
      %643 = vmatpush.msra.mxu0 0.0
      %644 = vmatpush.msra.mxu0 0.0
      %645 = vmatpush.msra.mxu0 %v606
      %646 = vmatmul.f32.gmra.mxu0 %v602
      %v647 = vpop.f32.mrf.mxu0
      %v648 = vadd.f32 0.0, %v647
      %649 = vdwg.mxu0
      %650 = vmatpush.msra.mxu0 0.0
      %651 = vmatpush.msra.mxu0 0.0
      %652 = vmatpush.msra.mxu0 0.0
      %653 = vmatpush.msra.mxu0 0.0
      %654 = vmatpush.msra.mxu0 0.0
      %655 = vmatpush.msra.mxu0 0.0
      %656 = vmatpush.msra.mxu0 0.0
      %657 = vmatpush.msra.mxu0 0.0
      %658 = vmatpush.msra.mxu0 0.0
      %659 = vmatpush.msra.mxu0 0.0
      %660 = vmatpush.msra.mxu0 0.0
      %661 = vmatpush.msra.mxu0 0.0
      %662 = vmatpush.msra.mxu0 0.0
      %663 = vmatpush.msra.mxu0 0.0
      %664 = vmatpush.msra.mxu0 0.0
      %665 = vmatpush.msra.mxu0 %v608
      %666 = vmatmul.f32.gmra.mxu0 %v602
      %v667 = vpop.f32.mrf.mxu0
      %v668 = vadd.f32 0.0, %v667
      %669 = vdwg.mxu0
      %v670 = vadd.f32 %v585, %v628
      %v671 = vadd.f32 %v586, %v648
      %v672 = vadd.f32 %v587, %v668
      %673 = vrot.lane.b32.xlu0 %v263, 108
      %v674 = vpop.permute.xlu0 %673
      %675 = vrot.lane.b32.xlu0 %v260, 109
      %v676 = vpop.permute.xlu0 %675
      %677 = vrot.lane.b32.xlu0 %v261, 109
      %v678 = vpop.permute.xlu0 %677
      %679 = vrot.lane.b32.xlu0 %v262, 109
      %v680 = vpop.permute.xlu0 %679
      %681 = vrot.lane.b32.xlu0 %v254, 109
      %v682 = vpop.permute.xlu0 %681
      %vm683 = vcmask 891904
      %v684 = vsel %vm683, %v676, %v678
      %v685 = vsel %vm683, %v678, %v680
      %v686 = vsel %vm683, %v680, %v682
      %v687 = vsel %vm280, %v674, 0
      %v689 = vsel %vm283, %v684, 0
      %v691 = vsel %vm283, %v685, 0
      %v693 = vsel %vm283, %v686, 0
      %695 = vmatpush.msra.mxu0 0.0
      %696 = vmatpush.msra.mxu0 0.0
      %697 = vmatpush.msra.mxu0 0.0
      %698 = vmatpush.msra.mxu0 0.0
      %699 = vmatpush.msra.mxu0 0.0
      %700 = vmatpush.msra.mxu0 0.0
      %701 = vmatpush.msra.mxu0 0.0
      %702 = vmatpush.msra.mxu0 0.0
      %703 = vmatpush.msra.mxu0 0.0
      %704 = vmatpush.msra.mxu0 0.0
      %705 = vmatpush.msra.mxu0 0.0
      %706 = vmatpush.msra.mxu0 0.0
      %707 = vmatpush.msra.mxu0 0.0
      %708 = vmatpush.msra.mxu0 0.0
      %709 = vmatpush.msra.mxu0 0.0
      %710 = vmatpush.msra.mxu0 %v689
      %711 = vmatmul.f32.gmra.mxu0 %v687
      %v712 = vpop.f32.mrf.mxu0
      %v713 = vadd.f32 0.0, %v712
      %714 = vdwg.mxu0
      %715 = vmatpush.msra.mxu0 0.0
      %716 = vmatpush.msra.mxu0 0.0
      %717 = vmatpush.msra.mxu0 0.0
      %718 = vmatpush.msra.mxu0 0.0
      %719 = vmatpush.msra.mxu0 0.0
      %720 = vmatpush.msra.mxu0 0.0
      %721 = vmatpush.msra.mxu0 0.0
      %722 = vmatpush.msra.mxu0 0.0
      %723 = vmatpush.msra.mxu0 0.0
      %724 = vmatpush.msra.mxu0 0.0
      %725 = vmatpush.msra.mxu0 0.0
      %726 = vmatpush.msra.mxu0 0.0
      %727 = vmatpush.msra.mxu0 0.0
      %728 = vmatpush.msra.mxu0 0.0
      %729 = vmatpush.msra.mxu0 0.0
      %730 = vmatpush.msra.mxu0 %v691
      %731 = vmatmul.f32.gmra.mxu0 %v687
      %v732 = vpop.f32.mrf.mxu0
      %v733 = vadd.f32 0.0, %v732
      %734 = vdwg.mxu0
      %735 = vmatpush.msra.mxu0 0.0
      %736 = vmatpush.msra.mxu0 0.0
      %737 = vmatpush.msra.mxu0 0.0
      %738 = vmatpush.msra.mxu0 0.0
      %739 = vmatpush.msra.mxu0 0.0
      %740 = vmatpush.msra.mxu0 0.0
      %741 = vmatpush.msra.mxu0 0.0
      %742 = vmatpush.msra.mxu0 0.0
      %743 = vmatpush.msra.mxu0 0.0
      %744 = vmatpush.msra.mxu0 0.0
      %745 = vmatpush.msra.mxu0 0.0
      %746 = vmatpush.msra.mxu0 0.0
      %747 = vmatpush.msra.mxu0 0.0
      %748 = vmatpush.msra.mxu0 0.0
      %749 = vmatpush.msra.mxu0 0.0
      %750 = vmatpush.msra.mxu0 %v693
      %751 = vmatmul.f32.gmra.mxu0 %v687
      %v752 = vpop.f32.mrf.mxu0
      %v753 = vadd.f32 0.0, %v752
      %754 = vdwg.mxu0
      %v755 = vadd.f32 %v670, %v713
      %v756 = vadd.f32 %v671, %v733
      %v757 = vadd.f32 %v672, %v753
      %758 = vrot.lane.b32.xlu0 %v263, 104
      %v759 = vpop.permute.xlu0 %758
      %760 = vrot.lane.b32.xlu0 %v260, 108
      %v761 = vpop.permute.xlu0 %760
      %762 = vrot.lane.b32.xlu0 %v261, 108
      %v763 = vpop.permute.xlu0 %762
      %764 = vrot.lane.b32.xlu0 %v262, 108
      %v765 = vpop.permute.xlu0 %764
      %766 = vrot.lane.b32.xlu0 %v254, 108
      %v767 = vpop.permute.xlu0 %766
      %vm768 = vcmask 883712
      %v769 = vsel %vm768, %v761, %v763
      %v770 = vsel %vm768, %v763, %v765
      %v771 = vsel %vm768, %v765, %v767
      %v772 = vsel %vm280, %v759, 0
      %v774 = vsel %vm283, %v769, 0
      %v776 = vsel %vm283, %v770, 0
      %v778 = vsel %vm283, %v771, 0
      %780 = vmatpush.msra.mxu0 0.0
      %781 = vmatpush.msra.mxu0 0.0
      %782 = vmatpush.msra.mxu0 0.0
      %783 = vmatpush.msra.mxu0 0.0
      %784 = vmatpush.msra.mxu0 0.0
      %785 = vmatpush.msra.mxu0 0.0
      %786 = vmatpush.msra.mxu0 0.0
      %787 = vmatpush.msra.mxu0 0.0
      %788 = vmatpush.msra.mxu0 0.0
      %789 = vmatpush.msra.mxu0 0.0
      %790 = vmatpush.msra.mxu0 0.0
      %791 = vmatpush.msra.mxu0 0.0
      %792 = vmatpush.msra.mxu0 0.0
      %793 = vmatpush.msra.mxu0 0.0
      %794 = vmatpush.msra.mxu0 0.0
      %795 = vmatpush.msra.mxu0 %v774
      %796 = vmatmul.f32.gmra.mxu0 %v772
      %v797 = vpop.f32.mrf.mxu0
      %v798 = vadd.f32 0.0, %v797
      %799 = vdwg.mxu0
      %800 = vmatpush.msra.mxu0 0.0
      %801 = vmatpush.msra.mxu0 0.0
      %802 = vmatpush.msra.mxu0 0.0
      %803 = vmatpush.msra.mxu0 0.0
      %804 = vmatpush.msra.mxu0 0.0
      %805 = vmatpush.msra.mxu0 0.0
      %806 = vmatpush.msra.mxu0 0.0
      %807 = vmatpush.msra.mxu0 0.0
      %808 = vmatpush.msra.mxu0 0.0
      %809 = vmatpush.msra.mxu0 0.0
      %810 = vmatpush.msra.mxu0 0.0
      %811 = vmatpush.msra.mxu0 0.0
      %812 = vmatpush.msra.mxu0 0.0
      %813 = vmatpush.msra.mxu0 0.0
      %814 = vmatpush.msra.mxu0 0.0
      %815 = vmatpush.msra.mxu0 %v776
      %816 = vmatmul.f32.gmra.mxu0 %v772
      %v817 = vpop.f32.mrf.mxu0
      %v818 = vadd.f32 0.0, %v817
      %819 = vdwg.mxu0
      %820 = vmatpush.msra.mxu0 0.0
      %821 = vmatpush.msra.mxu0 0.0
      %822 = vmatpush.msra.mxu0 0.0
      %823 = vmatpush.msra.mxu0 0.0
      %824 = vmatpush.msra.mxu0 0.0
      %825 = vmatpush.msra.mxu0 0.0
      %826 = vmatpush.msra.mxu0 0.0
      %827 = vmatpush.msra.mxu0 0.0
      %828 = vmatpush.msra.mxu0 0.0
      %829 = vmatpush.msra.mxu0 0.0
      %830 = vmatpush.msra.mxu0 0.0
      %831 = vmatpush.msra.mxu0 0.0
      %832 = vmatpush.msra.mxu0 0.0
      %833 = vmatpush.msra.mxu0 0.0
      %834 = vmatpush.msra.mxu0 0.0
      %835 = vmatpush.msra.mxu0 %v778
      %836 = vmatmul.f32.gmra.mxu0 %v772
      %v837 = vpop.f32.mrf.mxu0
      %v838 = vadd.f32 0.0, %v837
      %839 = vdwg.mxu0
      %v840 = vadd.f32 %v755, %v798
      %v841 = vadd.f32 %v756, %v818
      %v842 = vadd.f32 %v757, %v838
      %843 = vrot.lane.b32.xlu0 %v263, 100
      %v844 = vpop.permute.xlu0 %843
      %845 = vrot.lane.b32.xlu0 %v260, 107
      %v846 = vpop.permute.xlu0 %845
      %847 = vrot.lane.b32.xlu0 %v261, 107
      %v848 = vpop.permute.xlu0 %847
      %849 = vrot.lane.b32.xlu0 %v262, 107
      %v850 = vpop.permute.xlu0 %849
      %851 = vrot.lane.b32.xlu0 %v254, 107
      %v852 = vpop.permute.xlu0 %851
      %vm853 = vcmask 875520
      %v854 = vsel %vm853, %v846, %v848
      %v855 = vsel %vm853, %v848, %v850
      %v856 = vsel %vm853, %v850, %v852
      %v857 = vsel %vm280, %v844, 0
      %v859 = vsel %vm283, %v854, 0
      %v861 = vsel %vm283, %v855, 0
      %v863 = vsel %vm283, %v856, 0
      %865 = vmatpush.msra.mxu0 0.0
      %866 = vmatpush.msra.mxu0 0.0
      %867 = vmatpush.msra.mxu0 0.0
      %868 = vmatpush.msra.mxu0 0.0
      %869 = vmatpush.msra.mxu0 0.0
      %870 = vmatpush.msra.mxu0 0.0
      %871 = vmatpush.msra.mxu0 0.0
      %872 = vmatpush.msra.mxu0 0.0
      %873 = vmatpush.msra.mxu0 0.0
      %874 = vmatpush.msra.mxu0 0.0
      %875 = vmatpush.msra.mxu0 0.0
      %876 = vmatpush.msra.mxu0 0.0
      %877 = vmatpush.msra.mxu0 0.0
      %878 = vmatpush.msra.mxu0 0.0
      %879 = vmatpush.msra.mxu0 0.0
      %880 = vmatpush.msra.mxu0 %v859
      %881 = vmatmul.f32.gmra.mxu0 %v857
      %v882 = vpop.f32.mrf.mxu0
      %v883 = vadd.f32 0.0, %v882
      %884 = vdwg.mxu0
      %885 = vmatpush.msra.mxu0 0.0
      %886 = vmatpush.msra.mxu0 0.0
      %887 = vmatpush.msra.mxu0 0.0
      %888 = vmatpush.msra.mxu0 0.0
      %889 = vmatpush.msra.mxu0 0.0
      %890 = vmatpush.msra.mxu0 0.0
      %891 = vmatpush.msra.mxu0 0.0
      %892 = vmatpush.msra.mxu0 0.0
      %893 = vmatpush.msra.mxu0 0.0
      %894 = vmatpush.msra.mxu0 0.0
      %895 = vmatpush.msra.mxu0 0.0
      %896 = vmatpush.msra.mxu0 0.0
      %897 = vmatpush.msra.mxu0 0.0
      %898 = vmatpush.msra.mxu0 0.0
      %899 = vmatpush.msra.mxu0 0.0
      %900 = vmatpush.msra.mxu0 %v861
      %901 = vmatmul.f32.gmra.mxu0 %v857
      %v902 = vpop.f32.mrf.mxu0
      %v903 = vadd.f32 0.0, %v902
      %904 = vdwg.mxu0
      %905 = vmatpush.msra.mxu0 0.0
      %906 = vmatpush.msra.mxu0 0.0
      %907 = vmatpush.msra.mxu0 0.0
      %908 = vmatpush.msra.mxu0 0.0
      %909 = vmatpush.msra.mxu0 0.0
      %910 = vmatpush.msra.mxu0 0.0
      %911 = vmatpush.msra.mxu0 0.0
      %912 = vmatpush.msra.mxu0 0.0
      %913 = vmatpush.msra.mxu0 0.0
      %914 = vmatpush.msra.mxu0 0.0
      %915 = vmatpush.msra.mxu0 0.0
      %916 = vmatpush.msra.mxu0 0.0
      %917 = vmatpush.msra.mxu0 0.0
      %918 = vmatpush.msra.mxu0 0.0
      %919 = vmatpush.msra.mxu0 0.0
      %920 = vmatpush.msra.mxu0 %v863
      %921 = vmatmul.f32.gmra.mxu0 %v857
      %v922 = vpop.f32.mrf.mxu0
      %v923 = vadd.f32 0.0, %v922
      %924 = vdwg.mxu0
      %v925 = vadd.f32 %v840, %v883
      %v926 = vadd.f32 %v841, %v903
      %v927 = vadd.f32 %v842, %v923
      %928 = vrot.lane.b32.xlu0 %v263, 96
      %v929 = vpop.permute.xlu0 %928
      %930 = vrot.lane.b32.xlu0 %v260, 92
      %v931 = vpop.permute.xlu0 %930
      %932 = vrot.lane.b32.xlu0 %v261, 92
      %v933 = vpop.permute.xlu0 %932
      %934 = vrot.lane.b32.xlu0 %v262, 92
      %v935 = vpop.permute.xlu0 %934
      %936 = vrot.lane.b32.xlu0 %v254, 92
      %v937 = vpop.permute.xlu0 %936
      %vm938 = vcmask 752640
      %v939 = vsel %vm938, %v931, %v933
      %v940 = vsel %vm938, %v933, %v935
      %v941 = vsel %vm938, %v935, %v937
      %v942 = vsel %vm280, %v929, 0
      %v944 = vsel %vm283, %v939, 0
      %v946 = vsel %vm283, %v940, 0
      %v948 = vsel %vm283, %v941, 0
      %950 = vmatpush.msra.mxu0 0.0
      %951 = vmatpush.msra.mxu0 0.0
      %952 = vmatpush.msra.mxu0 0.0
      %953 = vmatpush.msra.mxu0 0.0
      %954 = vmatpush.msra.mxu0 0.0
      %955 = vmatpush.msra.mxu0 0.0
      %956 = vmatpush.msra.mxu0 0.0
      %957 = vmatpush.msra.mxu0 0.0
      %958 = vmatpush.msra.mxu0 0.0
      %959 = vmatpush.msra.mxu0 0.0
      %960 = vmatpush.msra.mxu0 0.0
      %961 = vmatpush.msra.mxu0 0.0
      %962 = vmatpush.msra.mxu0 0.0
      %963 = vmatpush.msra.mxu0 0.0
      %964 = vmatpush.msra.mxu0 0.0
      %965 = vmatpush.msra.mxu0 %v944
      %966 = vmatmul.f32.gmra.mxu0 %v942
      %v967 = vpop.f32.mrf.mxu0
      %v968 = vadd.f32 0.0, %v967
      %969 = vdwg.mxu0
      %970 = vmatpush.msra.mxu0 0.0
      %971 = vmatpush.msra.mxu0 0.0
      %972 = vmatpush.msra.mxu0 0.0
      %973 = vmatpush.msra.mxu0 0.0
      %974 = vmatpush.msra.mxu0 0.0
      %975 = vmatpush.msra.mxu0 0.0
      %976 = vmatpush.msra.mxu0 0.0
      %977 = vmatpush.msra.mxu0 0.0
      %978 = vmatpush.msra.mxu0 0.0
      %979 = vmatpush.msra.mxu0 0.0
      %980 = vmatpush.msra.mxu0 0.0
      %981 = vmatpush.msra.mxu0 0.0
      %982 = vmatpush.msra.mxu0 0.0
      %983 = vmatpush.msra.mxu0 0.0
      %984 = vmatpush.msra.mxu0 0.0
      %985 = vmatpush.msra.mxu0 %v946
      %986 = vmatmul.f32.gmra.mxu0 %v942
      %v987 = vpop.f32.mrf.mxu0
      %v988 = vadd.f32 0.0, %v987
      %989 = vdwg.mxu0
      %990 = vmatpush.msra.mxu0 0.0
      %991 = vmatpush.msra.mxu0 0.0
      %992 = vmatpush.msra.mxu0 0.0
      %993 = vmatpush.msra.mxu0 0.0
      %994 = vmatpush.msra.mxu0 0.0
      %995 = vmatpush.msra.mxu0 0.0
      %996 = vmatpush.msra.mxu0 0.0
      %997 = vmatpush.msra.mxu0 0.0
      %998 = vmatpush.msra.mxu0 0.0
      %999 = vmatpush.msra.mxu0 0.0
      %1000 = vmatpush.msra.mxu0 0.0
      %1001 = vmatpush.msra.mxu0 0.0
      %1002 = vmatpush.msra.mxu0 0.0
      %1003 = vmatpush.msra.mxu0 0.0
      %1004 = vmatpush.msra.mxu0 0.0
      %1005 = vmatpush.msra.mxu0 %v948
      %1006 = vmatmul.f32.gmra.mxu0 %v942
      %v1007 = vpop.f32.mrf.mxu0
      %v1008 = vadd.f32 0.0, %v1007
      %1009 = vdwg.mxu0
      %v1010 = vadd.f32 %v925, %v968
      %v1011 = vadd.f32 %v926, %v988
      %v1012 = vadd.f32 %v927, %v1008
      %1013 = vrot.lane.b32.xlu0 %v263, 92
      %v1014 = vpop.permute.xlu0 %1013
      %1015 = vrot.lane.b32.xlu0 %v260, 91
      %v1016 = vpop.permute.xlu0 %1015
      %1017 = vrot.lane.b32.xlu0 %v261, 91
      %v1018 = vpop.permute.xlu0 %1017
      %1019 = vrot.lane.b32.xlu0 %v262, 91
      %v1020 = vpop.permute.xlu0 %1019
      %1021 = vrot.lane.b32.xlu0 %v254, 91
      %v1022 = vpop.permute.xlu0 %1021
      %vm1023 = vcmask 744448
      %v1024 = vsel %vm1023, %v1016, %v1018
      %v1025 = vsel %vm1023, %v1018, %v1020
      %v1026 = vsel %vm1023, %v1020, %v1022
      %v1027 = vsel %vm280, %v1014, 0
      %v1029 = vsel %vm283, %v1024, 0
      %v1031 = vsel %vm283, %v1025, 0
      %v1033 = vsel %vm283, %v1026, 0
      %1035 = vmatpush.msra.mxu0 0.0
      %1036 = vmatpush.msra.mxu0 0.0
      %1037 = vmatpush.msra.mxu0 0.0
      %1038 = vmatpush.msra.mxu0 0.0
      %1039 = vmatpush.msra.mxu0 0.0
      %1040 = vmatpush.msra.mxu0 0.0
      %1041 = vmatpush.msra.mxu0 0.0
      %1042 = vmatpush.msra.mxu0 0.0
      %1043 = vmatpush.msra.mxu0 0.0
      %1044 = vmatpush.msra.mxu0 0.0
      %1045 = vmatpush.msra.mxu0 0.0
      %1046 = vmatpush.msra.mxu0 0.0
      %1047 = vmatpush.msra.mxu0 0.0
      %1048 = vmatpush.msra.mxu0 0.0
      %1049 = vmatpush.msra.mxu0 0.0
      %1050 = vmatpush.msra.mxu0 %v1029
      %1051 = vmatmul.f32.gmra.mxu0 %v1027
      %v1052 = vpop.f32.mrf.mxu0
      %v1053 = vadd.f32 0.0, %v1052
      %1054 = vdwg.mxu0
      %1055 = vmatpush.msra.mxu0 0.0
      %1056 = vmatpush.msra.mxu0 0.0
      %1057 = vmatpush.msra.mxu0 0.0
      %1058 = vmatpush.msra.mxu0 0.0
      %1059 = vmatpush.msra.mxu0 0.0
      %1060 = vmatpush.msra.mxu0 0.0
      %1061 = vmatpush.msra.mxu0 0.0
      %1062 = vmatpush.msra.mxu0 0.0
      %1063 = vmatpush.msra.mxu0 0.0
      %1064 = vmatpush.msra.mxu0 0.0
      %1065 = vmatpush.msra.mxu0 0.0
      %1066 = vmatpush.msra.mxu0 0.0
      %1067 = vmatpush.msra.mxu0 0.0
      %1068 = vmatpush.msra.mxu0 0.0
      %1069 = vmatpush.msra.mxu0 0.0
      %1070 = vmatpush.msra.mxu0 %v1031
      %1071 = vmatmul.f32.gmra.mxu0 %v1027
      %v1072 = vpop.f32.mrf.mxu0
      %v1073 = vadd.f32 0.0, %v1072
      %1074 = vdwg.mxu0
      %1075 = vmatpush.msra.mxu0 0.0
      %1076 = vmatpush.msra.mxu0 0.0
      %1077 = vmatpush.msra.mxu0 0.0
      %1078 = vmatpush.msra.mxu0 0.0
      %1079 = vmatpush.msra.mxu0 0.0
      %1080 = vmatpush.msra.mxu0 0.0
      %1081 = vmatpush.msra.mxu0 0.0
      %1082 = vmatpush.msra.mxu0 0.0
      %1083 = vmatpush.msra.mxu0 0.0
      %1084 = vmatpush.msra.mxu0 0.0
      %1085 = vmatpush.msra.mxu0 0.0
      %1086 = vmatpush.msra.mxu0 0.0
      %1087 = vmatpush.msra.mxu0 0.0
      %1088 = vmatpush.msra.mxu0 0.0
      %1089 = vmatpush.msra.mxu0 0.0
      %1090 = vmatpush.msra.mxu0 %v1033
      %1091 = vmatmul.f32.gmra.mxu0 %v1027
      %v1092 = vpop.f32.mrf.mxu0
      %v1093 = vadd.f32 0.0, %v1092
      %1094 = vdwg.mxu0
      %v1095 = vadd.f32 %v1010, %v1053
      %v1096 = vadd.f32 %v1011, %v1073
      %v1097 = vadd.f32 %v1012, %v1093
      %1098 = vrot.lane.b32.xlu0 %v263, 88
      %v1099 = vpop.permute.xlu0 %1098
      %1100 = vrot.lane.b32.xlu0 %v260, 90
      %v1101 = vpop.permute.xlu0 %1100
      %1102 = vrot.lane.b32.xlu0 %v261, 90
      %v1103 = vpop.permute.xlu0 %1102
      %1104 = vrot.lane.b32.xlu0 %v262, 90
      %v1105 = vpop.permute.xlu0 %1104
      %1106 = vrot.lane.b32.xlu0 %v254, 90
      %v1107 = vpop.permute.xlu0 %1106
      %vm1108 = vcmask 736256
      %v1109 = vsel %vm1108, %v1101, %v1103
      %v1110 = vsel %vm1108, %v1103, %v1105
      %v1111 = vsel %vm1108, %v1105, %v1107
      %v1112 = vsel %vm280, %v1099, 0
      %v1114 = vsel %vm283, %v1109, 0
      %v1116 = vsel %vm283, %v1110, 0
      %v1118 = vsel %vm283, %v1111, 0
      %1120 = vmatpush.msra.mxu0 0.0
      %1121 = vmatpush.msra.mxu0 0.0
      %1122 = vmatpush.msra.mxu0 0.0
      %1123 = vmatpush.msra.mxu0 0.0
      %1124 = vmatpush.msra.mxu0 0.0
      %1125 = vmatpush.msra.mxu0 0.0
      %1126 = vmatpush.msra.mxu0 0.0
      %1127 = vmatpush.msra.mxu0 0.0
      %1128 = vmatpush.msra.mxu0 0.0
      %1129 = vmatpush.msra.mxu0 0.0
      %1130 = vmatpush.msra.mxu0 0.0
      %1131 = vmatpush.msra.mxu0 0.0
      %1132 = vmatpush.msra.mxu0 0.0
      %1133 = vmatpush.msra.mxu0 0.0
      %1134 = vmatpush.msra.mxu0 0.0
      %1135 = vmatpush.msra.mxu0 %v1114
      %1136 = vmatmul.f32.gmra.mxu0 %v1112
      %v1137 = vpop.f32.mrf.mxu0
      %v1138 = vadd.f32 0.0, %v1137
      %1139 = vdwg.mxu0
      %1140 = vmatpush.msra.mxu0 0.0
      %1141 = vmatpush.msra.mxu0 0.0
      %1142 = vmatpush.msra.mxu0 0.0
      %1143 = vmatpush.msra.mxu0 0.0
      %1144 = vmatpush.msra.mxu0 0.0
      %1145 = vmatpush.msra.mxu0 0.0
      %1146 = vmatpush.msra.mxu0 0.0
      %1147 = vmatpush.msra.mxu0 0.0
      %1148 = vmatpush.msra.mxu0 0.0
      %1149 = vmatpush.msra.mxu0 0.0
      %1150 = vmatpush.msra.mxu0 0.0
      %1151 = vmatpush.msra.mxu0 0.0
      %1152 = vmatpush.msra.mxu0 0.0
      %1153 = vmatpush.msra.mxu0 0.0
      %1154 = vmatpush.msra.mxu0 0.0
      %1155 = vmatpush.msra.mxu0 %v1116
      %1156 = vmatmul.f32.gmra.mxu0 %v1112
      %v1157 = vpop.f32.mrf.mxu0
      %v1158 = vadd.f32 0.0, %v1157
      %1159 = vdwg.mxu0
      %1160 = vmatpush.msra.mxu0 0.0
      %1161 = vmatpush.msra.mxu0 0.0
      %1162 = vmatpush.msra.mxu0 0.0
      %1163 = vmatpush.msra.mxu0 0.0
      %1164 = vmatpush.msra.mxu0 0.0
      %1165 = vmatpush.msra.mxu0 0.0
      %1166 = vmatpush.msra.mxu0 0.0
      %1167 = vmatpush.msra.mxu0 0.0
      %1168 = vmatpush.msra.mxu0 0.0
      %1169 = vmatpush.msra.mxu0 0.0
      %1170 = vmatpush.msra.mxu0 0.0
      %1171 = vmatpush.msra.mxu0 0.0
      %1172 = vmatpush.msra.mxu0 0.0
      %1173 = vmatpush.msra.mxu0 0.0
      %1174 = vmatpush.msra.mxu0 0.0
      %1175 = vmatpush.msra.mxu0 %v1118
      %1176 = vmatmul.f32.gmra.mxu0 %v1112
      %v1177 = vpop.f32.mrf.mxu0
      %v1178 = vadd.f32 0.0, %v1177
      %1179 = vdwg.mxu0
      %v1180 = vadd.f32 %v1095, %v1138
      %v1181 = vadd.f32 %v1096, %v1158
      %v1182 = vadd.f32 %v1097, %v1178
      %1183 = vrot.lane.b32.xlu0 %v263, 84
      %v1184 = vpop.permute.xlu0 %1183
      %1185 = vrot.lane.b32.xlu0 %v260, 89
      %v1186 = vpop.permute.xlu0 %1185
      %1187 = vrot.lane.b32.xlu0 %v261, 89
      %v1188 = vpop.permute.xlu0 %1187
      %1189 = vrot.lane.b32.xlu0 %v262, 89
      %v1190 = vpop.permute.xlu0 %1189
      %1191 = vrot.lane.b32.xlu0 %v254, 89
      %v1192 = vpop.permute.xlu0 %1191
      %vm1193 = vcmask 728064
      %v1194 = vsel %vm1193, %v1186, %v1188
      %v1195 = vsel %vm1193, %v1188, %v1190
      %v1196 = vsel %vm1193, %v1190, %v1192
      %v1197 = vsel %vm280, %v1184, 0
      %v1199 = vsel %vm283, %v1194, 0
      %v1201 = vsel %vm283, %v1195, 0
      %v1203 = vsel %vm283, %v1196, 0
      %1205 = vmatpush.msra.mxu0 0.0
      %1206 = vmatpush.msra.mxu0 0.0
      %1207 = vmatpush.msra.mxu0 0.0
      %1208 = vmatpush.msra.mxu0 0.0
      %1209 = vmatpush.msra.mxu0 0.0
      %1210 = vmatpush.msra.mxu0 0.0
      %1211 = vmatpush.msra.mxu0 0.0
      %1212 = vmatpush.msra.mxu0 0.0
      %1213 = vmatpush.msra.mxu0 0.0
      %1214 = vmatpush.msra.mxu0 0.0
      %1215 = vmatpush.msra.mxu0 0.0
      %1216 = vmatpush.msra.mxu0 0.0
      %1217 = vmatpush.msra.mxu0 0.0
      %1218 = vmatpush.msra.mxu0 0.0
      %1219 = vmatpush.msra.mxu0 0.0
      %1220 = vmatpush.msra.mxu0 %v1199
      %1221 = vmatmul.f32.gmra.mxu0 %v1197
      %v1222 = vpop.f32.mrf.mxu0
      %v1223 = vadd.f32 0.0, %v1222
      %1224 = vdwg.mxu0
      %1225 = vmatpush.msra.mxu0 0.0
      %1226 = vmatpush.msra.mxu0 0.0
      %1227 = vmatpush.msra.mxu0 0.0
      %1228 = vmatpush.msra.mxu0 0.0
      %1229 = vmatpush.msra.mxu0 0.0
      %1230 = vmatpush.msra.mxu0 0.0
      %1231 = vmatpush.msra.mxu0 0.0
      %1232 = vmatpush.msra.mxu0 0.0
      %1233 = vmatpush.msra.mxu0 0.0
      %1234 = vmatpush.msra.mxu0 0.0
      %1235 = vmatpush.msra.mxu0 0.0
      %1236 = vmatpush.msra.mxu0 0.0
      %1237 = vmatpush.msra.mxu0 0.0
      %1238 = vmatpush.msra.mxu0 0.0
      %1239 = vmatpush.msra.mxu0 0.0
      %1240 = vmatpush.msra.mxu0 %v1201
      %1241 = vmatmul.f32.gmra.mxu0 %v1197
      %v1242 = vpop.f32.mrf.mxu0
      %v1243 = vadd.f32 0.0, %v1242
      %1244 = vdwg.mxu0
      %1245 = vmatpush.msra.mxu0 0.0
      %1246 = vmatpush.msra.mxu0 0.0
      %1247 = vmatpush.msra.mxu0 0.0
      %1248 = vmatpush.msra.mxu0 0.0
      %1249 = vmatpush.msra.mxu0 0.0
      %1250 = vmatpush.msra.mxu0 0.0
      %1251 = vmatpush.msra.mxu0 0.0
      %1252 = vmatpush.msra.mxu0 0.0
      %1253 = vmatpush.msra.mxu0 0.0
      %1254 = vmatpush.msra.mxu0 0.0
      %1255 = vmatpush.msra.mxu0 0.0
      %1256 = vmatpush.msra.mxu0 0.0
      %1257 = vmatpush.msra.mxu0 0.0
      %1258 = vmatpush.msra.mxu0 0.0
      %1259 = vmatpush.msra.mxu0 0.0
      %1260 = vmatpush.msra.mxu0 %v1203
      %1261 = vmatmul.f32.gmra.mxu0 %v1197
      %v1262 = vpop.f32.mrf.mxu0
      %v1263 = vadd.f32 0.0, %v1262
      %1264 = vdwg.mxu0
      %v1265 = vadd.f32 %v1180, %v1223
      %v1266 = vadd.f32 %v1181, %v1243
      %v1267 = vadd.f32 %v1182, %v1263
      %1268 = vrot.lane.b32.xlu0 %v263, 80
      %v1269 = vpop.permute.xlu0 %1268
      %1270 = vrot.lane.b32.xlu0 %v260, 74
      %v1271 = vpop.permute.xlu0 %1270
      %1272 = vrot.lane.b32.xlu0 %v261, 74
      %v1273 = vpop.permute.xlu0 %1272
      %1274 = vrot.lane.b32.xlu0 %v262, 74
      %v1275 = vpop.permute.xlu0 %1274
      %1276 = vrot.lane.b32.xlu0 %v254, 74
      %v1277 = vpop.permute.xlu0 %1276
      %vm1278 = vcmask 605184
      %v1279 = vsel %vm1278, %v1271, %v1273
      %v1280 = vsel %vm1278, %v1273, %v1275
      %v1281 = vsel %vm1278, %v1275, %v1277
      %v1282 = vsel %vm280, %v1269, 0
      %v1284 = vsel %vm283, %v1279, 0
      %v1286 = vsel %vm283, %v1280, 0
      %v1288 = vsel %vm283, %v1281, 0
      %1290 = vmatpush.msra.mxu0 0.0
      %1291 = vmatpush.msra.mxu0 0.0
      %1292 = vmatpush.msra.mxu0 0.0
      %1293 = vmatpush.msra.mxu0 0.0
      %1294 = vmatpush.msra.mxu0 0.0
      %1295 = vmatpush.msra.mxu0 0.0
      %1296 = vmatpush.msra.mxu0 0.0
      %1297 = vmatpush.msra.mxu0 0.0
      %1298 = vmatpush.msra.mxu0 0.0
      %1299 = vmatpush.msra.mxu0 0.0
      %1300 = vmatpush.msra.mxu0 0.0
      %1301 = vmatpush.msra.mxu0 0.0
      %1302 = vmatpush.msra.mxu0 0.0
      %1303 = vmatpush.msra.mxu0 0.0
      %1304 = vmatpush.msra.mxu0 0.0
      %1305 = vmatpush.msra.mxu0 %v1284
      %1306 = vmatmul.f32.gmra.mxu0 %v1282
      %v1307 = vpop.f32.mrf.mxu0
      %v1308 = vadd.f32 0.0, %v1307
      %1309 = vdwg.mxu0
      %1310 = vmatpush.msra.mxu0 0.0
      %1311 = vmatpush.msra.mxu0 0.0
      %1312 = vmatpush.msra.mxu0 0.0
      %1313 = vmatpush.msra.mxu0 0.0
      %1314 = vmatpush.msra.mxu0 0.0
      %1315 = vmatpush.msra.mxu0 0.0
      %1316 = vmatpush.msra.mxu0 0.0
      %1317 = vmatpush.msra.mxu0 0.0
      %1318 = vmatpush.msra.mxu0 0.0
      %1319 = vmatpush.msra.mxu0 0.0
      %1320 = vmatpush.msra.mxu0 0.0
      %1321 = vmatpush.msra.mxu0 0.0
      %1322 = vmatpush.msra.mxu0 0.0
      %1323 = vmatpush.msra.mxu0 0.0
      %1324 = vmatpush.msra.mxu0 0.0
      %1325 = vmatpush.msra.mxu0 %v1286
      %1326 = vmatmul.f32.gmra.mxu0 %v1282
      %v1327 = vpop.f32.mrf.mxu0
      %v1328 = vadd.f32 0.0, %v1327
      %1329 = vdwg.mxu0
      %1330 = vmatpush.msra.mxu0 0.0
      %1331 = vmatpush.msra.mxu0 0.0
      %1332 = vmatpush.msra.mxu0 0.0
      %1333 = vmatpush.msra.mxu0 0.0
      %1334 = vmatpush.msra.mxu0 0.0
      %1335 = vmatpush.msra.mxu0 0.0
      %1336 = vmatpush.msra.mxu0 0.0
      %1337 = vmatpush.msra.mxu0 0.0
      %1338 = vmatpush.msra.mxu0 0.0
      %1339 = vmatpush.msra.mxu0 0.0
      %1340 = vmatpush.msra.mxu0 0.0
      %1341 = vmatpush.msra.mxu0 0.0
      %1342 = vmatpush.msra.mxu0 0.0
      %1343 = vmatpush.msra.mxu0 0.0
      %1344 = vmatpush.msra.mxu0 0.0
      %1345 = vmatpush.msra.mxu0 %v1288
      %1346 = vmatmul.f32.gmra.mxu0 %v1282
      %v1347 = vpop.f32.mrf.mxu0
      %v1348 = vadd.f32 0.0, %v1347
      %1349 = vdwg.mxu0
      %v1350 = vadd.f32 %v1265, %v1308
      %v1351 = vadd.f32 %v1266, %v1328
      %v1352 = vadd.f32 %v1267, %v1348
      %1353 = vrot.lane.b32.xlu0 %v263, 76
      %v1354 = vpop.permute.xlu0 %1353
      %1355 = vrot.lane.b32.xlu0 %v260, 73
      %v1356 = vpop.permute.xlu0 %1355
      %1357 = vrot.lane.b32.xlu0 %v261, 73
      %v1358 = vpop.permute.xlu0 %1357
      %1359 = vrot.lane.b32.xlu0 %v262, 73
      %v1360 = vpop.permute.xlu0 %1359
      %1361 = vrot.lane.b32.xlu0 %v254, 73
      %v1362 = vpop.permute.xlu0 %1361
      %vm1363 = vcmask 596992
      %v1364 = vsel %vm1363, %v1356, %v1358
      %v1365 = vsel %vm1363, %v1358, %v1360
      %v1366 = vsel %vm1363, %v1360, %v1362
      %v1367 = vsel %vm280, %v1354, 0
      %v1369 = vsel %vm283, %v1364, 0
      %v1371 = vsel %vm283, %v1365, 0
      %v1373 = vsel %vm283, %v1366, 0
      %1375 = vmatpush.msra.mxu0 0.0
      %1376 = vmatpush.msra.mxu0 0.0
      %1377 = vmatpush.msra.mxu0 0.0
      %1378 = vmatpush.msra.mxu0 0.0
      %1379 = vmatpush.msra.mxu0 0.0
      %1380 = vmatpush.msra.mxu0 0.0
      %1381 = vmatpush.msra.mxu0 0.0
      %1382 = vmatpush.msra.mxu0 0.0
      %1383 = vmatpush.msra.mxu0 0.0
      %1384 = vmatpush.msra.mxu0 0.0
      %1385 = vmatpush.msra.mxu0 0.0
      %1386 = vmatpush.msra.mxu0 0.0
      %1387 = vmatpush.msra.mxu0 0.0
      %1388 = vmatpush.msra.mxu0 0.0
      %1389 = vmatpush.msra.mxu0 0.0
      %1390 = vmatpush.msra.mxu0 %v1369
      %1391 = vmatmul.f32.gmra.mxu0 %v1367
      %v1392 = vpop.f32.mrf.mxu0
      %v1393 = vadd.f32 0.0, %v1392
      %1394 = vdwg.mxu0
      %1395 = vmatpush.msra.mxu0 0.0
      %1396 = vmatpush.msra.mxu0 0.0
      %1397 = vmatpush.msra.mxu0 0.0
      %1398 = vmatpush.msra.mxu0 0.0
      %1399 = vmatpush.msra.mxu0 0.0
      %1400 = vmatpush.msra.mxu0 0.0
      %1401 = vmatpush.msra.mxu0 0.0
      %1402 = vmatpush.msra.mxu0 0.0
      %1403 = vmatpush.msra.mxu0 0.0
      %1404 = vmatpush.msra.mxu0 0.0
      %1405 = vmatpush.msra.mxu0 0.0
      %1406 = vmatpush.msra.mxu0 0.0
      %1407 = vmatpush.msra.mxu0 0.0
      %1408 = vmatpush.msra.mxu0 0.0
      %1409 = vmatpush.msra.mxu0 0.0
      %1410 = vmatpush.msra.mxu0 %v1371
      %1411 = vmatmul.f32.gmra.mxu0 %v1367
      %v1412 = vpop.f32.mrf.mxu0
      %v1413 = vadd.f32 0.0, %v1412
      %1414 = vdwg.mxu0
      %1415 = vmatpush.msra.mxu0 0.0
      %1416 = vmatpush.msra.mxu0 0.0
      %1417 = vmatpush.msra.mxu0 0.0
      %1418 = vmatpush.msra.mxu0 0.0
      %1419 = vmatpush.msra.mxu0 0.0
      %1420 = vmatpush.msra.mxu0 0.0
      %1421 = vmatpush.msra.mxu0 0.0
      %1422 = vmatpush.msra.mxu0 0.0
      %1423 = vmatpush.msra.mxu0 0.0
      %1424 = vmatpush.msra.mxu0 0.0
      %1425 = vmatpush.msra.mxu0 0.0
      %1426 = vmatpush.msra.mxu0 0.0
      %1427 = vmatpush.msra.mxu0 0.0
      %1428 = vmatpush.msra.mxu0 0.0
      %1429 = vmatpush.msra.mxu0 0.0
      %1430 = vmatpush.msra.mxu0 %v1373
      %1431 = vmatmul.f32.gmra.mxu0 %v1367
      %v1432 = vpop.f32.mrf.mxu0
      %v1433 = vadd.f32 0.0, %v1432
      %1434 = vdwg.mxu0
      %v1435 = vadd.f32 %v1350, %v1393
      %v1436 = vadd.f32 %v1351, %v1413
      %v1437 = vadd.f32 %v1352, %v1433
      %1438 = vrot.lane.b32.xlu0 %v263, 72
      %v1439 = vpop.permute.xlu0 %1438
      %1440 = vrot.lane.b32.xlu0 %v260, 72
      %v1441 = vpop.permute.xlu0 %1440
      %1442 = vrot.lane.b32.xlu0 %v261, 72
      %v1443 = vpop.permute.xlu0 %1442
      %1444 = vrot.lane.b32.xlu0 %v262, 72
      %v1445 = vpop.permute.xlu0 %1444
      %1446 = vrot.lane.b32.xlu0 %v254, 72
      %v1447 = vpop.permute.xlu0 %1446
      %vm1448 = vcmask 588800
      %v1449 = vsel %vm1448, %v1441, %v1443
      %v1450 = vsel %vm1448, %v1443, %v1445
      %v1451 = vsel %vm1448, %v1445, %v1447
      %v1452 = vsel %vm280, %v1439, 0
      %v1454 = vsel %vm283, %v1449, 0
      %v1456 = vsel %vm283, %v1450, 0
      %v1458 = vsel %vm283, %v1451, 0
      %1460 = vmatpush.msra.mxu0 0.0
      %1461 = vmatpush.msra.mxu0 0.0
      %1462 = vmatpush.msra.mxu0 0.0
      %1463 = vmatpush.msra.mxu0 0.0
      %1464 = vmatpush.msra.mxu0 0.0
      %1465 = vmatpush.msra.mxu0 0.0
      %1466 = vmatpush.msra.mxu0 0.0
      %1467 = vmatpush.msra.mxu0 0.0
      %1468 = vmatpush.msra.mxu0 0.0
      %1469 = vmatpush.msra.mxu0 0.0
      %1470 = vmatpush.msra.mxu0 0.0
      %1471 = vmatpush.msra.mxu0 0.0
      %1472 = vmatpush.msra.mxu0 0.0
      %1473 = vmatpush.msra.mxu0 0.0
      %1474 = vmatpush.msra.mxu0 0.0
      %1475 = vmatpush.msra.mxu0 %v1454
      %1476 = vmatmul.f32.gmra.mxu0 %v1452
      %v1477 = vpop.f32.mrf.mxu0
      %v1478 = vadd.f32 0.0, %v1477
      %1479 = vdwg.mxu0
      %1480 = vmatpush.msra.mxu0 0.0
      %1481 = vmatpush.msra.mxu0 0.0
      %1482 = vmatpush.msra.mxu0 0.0
      %1483 = vmatpush.msra.mxu0 0.0
      %1484 = vmatpush.msra.mxu0 0.0
      %1485 = vmatpush.msra.mxu0 0.0
      %1486 = vmatpush.msra.mxu0 0.0
      %1487 = vmatpush.msra.mxu0 0.0
      %1488 = vmatpush.msra.mxu0 0.0
      %1489 = vmatpush.msra.mxu0 0.0
      %1490 = vmatpush.msra.mxu0 0.0
      %1491 = vmatpush.msra.mxu0 0.0
      %1492 = vmatpush.msra.mxu0 0.0
      %1493 = vmatpush.msra.mxu0 0.0
      %1494 = vmatpush.msra.mxu0 0.0
      %1495 = vmatpush.msra.mxu0 %v1456
      %1496 = vmatmul.f32.gmra.mxu0 %v1452
      %v1497 = vpop.f32.mrf.mxu0
      %v1498 = vadd.f32 0.0, %v1497
      %1499 = vdwg.mxu0
      %1500 = vmatpush.msra.mxu0 0.0
      %1501 = vmatpush.msra.mxu0 0.0
      %1502 = vmatpush.msra.mxu0 0.0
      %1503 = vmatpush.msra.mxu0 0.0
      %1504 = vmatpush.msra.mxu0 0.0
      %1505 = vmatpush.msra.mxu0 0.0
      %1506 = vmatpush.msra.mxu0 0.0
      %1507 = vmatpush.msra.mxu0 0.0
      %1508 = vmatpush.msra.mxu0 0.0
      %1509 = vmatpush.msra.mxu0 0.0
      %1510 = vmatpush.msra.mxu0 0.0
      %1511 = vmatpush.msra.mxu0 0.0
      %1512 = vmatpush.msra.mxu0 0.0
      %1513 = vmatpush.msra.mxu0 0.0
      %1514 = vmatpush.msra.mxu0 0.0
      %1515 = vmatpush.msra.mxu0 %v1458
      %1516 = vmatmul.f32.gmra.mxu0 %v1452
      %v1517 = vpop.f32.mrf.mxu0
      %v1518 = vadd.f32 0.0, %v1517
      %1519 = vdwg.mxu0
      %v1520 = vadd.f32 %v1435, %v1478
      %v1521 = vadd.f32 %v1436, %v1498
      %v1522 = vadd.f32 %v1437, %v1518
      %1523 = vrot.lane.b32.xlu0 %v263, 68
      %v1524 = vpop.permute.xlu0 %1523
      %1525 = vrot.lane.b32.xlu0 %v260, 71
      %v1526 = vpop.permute.xlu0 %1525
      %1527 = vrot.lane.b32.xlu0 %v261, 71
      %v1528 = vpop.permute.xlu0 %1527
      %1529 = vrot.lane.b32.xlu0 %v262, 71
      %v1530 = vpop.permute.xlu0 %1529
      %1531 = vrot.lane.b32.xlu0 %v254, 71
      %v1532 = vpop.permute.xlu0 %1531
      %vm1533 = vcmask 580608
      %v1534 = vsel %vm1533, %v1526, %v1528
      %v1535 = vsel %vm1533, %v1528, %v1530
      %v1536 = vsel %vm1533, %v1530, %v1532
      %v1537 = vsel %vm280, %v1524, 0
      %v1539 = vsel %vm283, %v1534, 0
      %v1541 = vsel %vm283, %v1535, 0
      %v1543 = vsel %vm283, %v1536, 0
      %1545 = vmatpush.msra.mxu0 0.0
      %1546 = vmatpush.msra.mxu0 0.0
      %1547 = vmatpush.msra.mxu0 0.0
      %1548 = vmatpush.msra.mxu0 0.0
      %1549 = vmatpush.msra.mxu0 0.0
      %1550 = vmatpush.msra.mxu0 0.0
      %1551 = vmatpush.msra.mxu0 0.0
      %1552 = vmatpush.msra.mxu0 0.0
      %1553 = vmatpush.msra.mxu0 0.0
      %1554 = vmatpush.msra.mxu0 0.0
      %1555 = vmatpush.msra.mxu0 0.0
      %1556 = vmatpush.msra.mxu0 0.0
      %1557 = vmatpush.msra.mxu0 0.0
      %1558 = vmatpush.msra.mxu0 0.0
      %1559 = vmatpush.msra.mxu0 0.0
      %1560 = vmatpush.msra.mxu0 %v1539
      %1561 = vmatmul.f32.gmra.mxu0 %v1537
      %v1562 = vpop.f32.mrf.mxu0
      %v1563 = vadd.f32 0.0, %v1562
      %1564 = vdwg.mxu0
      %1565 = vmatpush.msra.mxu0 0.0
      %1566 = vmatpush.msra.mxu0 0.0
      %1567 = vmatpush.msra.mxu0 0.0
      %1568 = vmatpush.msra.mxu0 0.0
      %1569 = vmatpush.msra.mxu0 0.0
      %1570 = vmatpush.msra.mxu0 0.0
      %1571 = vmatpush.msra.mxu0 0.0
      %1572 = vmatpush.msra.mxu0 0.0
      %1573 = vmatpush.msra.mxu0 0.0
      %1574 = vmatpush.msra.mxu0 0.0
      %1575 = vmatpush.msra.mxu0 0.0
      %1576 = vmatpush.msra.mxu0 0.0
      %1577 = vmatpush.msra.mxu0 0.0
      %1578 = vmatpush.msra.mxu0 0.0
      %1579 = vmatpush.msra.mxu0 0.0
      %1580 = vmatpush.msra.mxu0 %v1541
      %1581 = vmatmul.f32.gmra.mxu0 %v1537
      %v1582 = vpop.f32.mrf.mxu0
      %v1583 = vadd.f32 0.0, %v1582
      %1584 = vdwg.mxu0
      %1585 = vmatpush.msra.mxu0 0.0
      %1586 = vmatpush.msra.mxu0 0.0
      %1587 = vmatpush.msra.mxu0 0.0
      %1588 = vmatpush.msra.mxu0 0.0
      %1589 = vmatpush.msra.mxu0 0.0
      %1590 = vmatpush.msra.mxu0 0.0
      %1591 = vmatpush.msra.mxu0 0.0
      %1592 = vmatpush.msra.mxu0 0.0
      %1593 = vmatpush.msra.mxu0 0.0
      %1594 = vmatpush.msra.mxu0 0.0
      %1595 = vmatpush.msra.mxu0 0.0
      %1596 = vmatpush.msra.mxu0 0.0
      %1597 = vmatpush.msra.mxu0 0.0
      %1598 = vmatpush.msra.mxu0 0.0
      %1599 = vmatpush.msra.mxu0 0.0
      %1600 = vmatpush.msra.mxu0 %v1543
      %1601 = vmatmul.f32.gmra.mxu0 %v1537
      %v1602 = vpop.f32.mrf.mxu0
      %v1603 = vadd.f32 0.0, %v1602
      %1604 = vdwg.mxu0
      %v1605 = vadd.f32 %v1520, %v1563
      %v1606 = vadd.f32 %v1521, %v1583
      %v1607 = vadd.f32 %v1522, %v1603
      %v1608 = vld [vmem:[%s1] sm:$0xff]
      %1610 = vset.pattern.permute.xlu0 0
      %1611 = vperm.xlu0 %1610, %v1608
      %v1612 = vpop.permute.xlu0 %1611
      %v1614 = vadd.f32 %v1605, %v1612
      %v1615 = vadd.f32 %v1606, %v1612
      %v1616 = vadd.f32 %v1607, %v1612
      %1617 = vst [vmem:[%s250] sm:$0xff] %v1614
      %1618 = vst [vmem:[%s250 + $0x8] sm:$0xff] %v1615
      %1619 = vst [vmem:[%s250 + $0x10] sm:$0xff] %v1616
      %s1620 = smul.u32 3, %s15
      %p1621 = scmp.lt.s32.totalorder %s1620, 5
      %s1622 = scalar_select %p1621, %s1620, 5
      %s1623 = smul.addr %s1622, 8
      %s1624 = scalar_lea.vmem %s4, %s1623
      // Predicated region
      $region37: #{lora_conv2d_forward.1} parent=35 // pred_check
        %p1625 = pneg %p131
      $region38: #{lora_conv2d_forward.1} parent=35 // pred_check_branch
        %1627 = sbr.rel (%p1625) target = $region40
      $region39: #{lora_conv2d_forward.1} parent=35 // pred_region
        %s1628 = smul.u32 3, %s15
      $region40: #{lora_conv2d_forward.1} parent=35 // pred_fallthru
        _
    $region36: #{lora_conv2d_forward.1} parent=5 // pred_fallthru
      _
    %p1629 = scmp.le.s32.totalorder 2, %s10
    // Predicated region
    $region41: #{lora_conv2d_forward.1} parent=5 // pred_check
      %p1630 = pneg %p1629
    $region42: #{lora_conv2d_forward.1} parent=5 // pred_check_branch
      %1632 = sbr.rel (%p1630) target = $region44
    $region43: #{lora_conv2d_forward.1} parent=5 // pred_region
      %s1633 = ssub.s32 %s10, 2
      // Predicated region
      $region45: #{lora_conv2d_forward.1} parent=43 // pred_check
        %p1634 = pneg %p137
      $region46: #{lora_conv2d_forward.1} parent=43 // pred_check_branch
        %1636 = sbr.rel (%p1634) target = $region48
      $region47: #{lora_conv2d_forward.1} parent=43 // pred_region
        %s1637 = smul.u32 3, %s16
        %p1638 = scmp.lt.s32.totalorder %s1637, 5
        %s1639 = scalar_select %p1638, %s1637, 5
        %s1640 = smul.addr %s1639, 8
        %s1641 = scalar_lea.vmem %s4, %s1640
      $region48: #{lora_conv2d_forward.1} parent=43 // pred_fallthru
        _
    $region44: #{lora_conv2d_forward.1} parent=5 // pred_fallthru
      _
  $region6: #{lora_conv2d_forward.1} parent=0 // loop_footer
    %s14 = sadd.s32 1, %s10
  $region7: #{lora_conv2d_forward.1} parent=0 // loop_footer_branch
    %9 = sbr.rel target = $region3
  $region8: #{lora_conv2d_forward.1} parent=0 // loop_exit
    _

</llo_original>
